<compile_context>
chip_gen: v7x
topology: tpu7x:2x2x1
jax: 0.10.0
libtpu: 0.0.40
codegen_flags: <defaults>
</compile_context>

<pallas_src>
import math
from functools import partial

import jax
import jax.numpy as jnp
from jax import lax
from jax.experimental import pallas as pl
from jax.experimental.pallas import tpu as pltpu


_ROW_TILE = 256   # rows of the flattened [N, H] activation per block
_COL_TILE = 256   # output columns per block (multiple of 128 -> unmasked vst)


def _gelu(x):
    # tanh-approximation GELU (as used in BERT-pytorch's GELU module)
    return 0.5 * x * (1.0 + jnp.tanh(
        math.sqrt(2.0 / math.pi) * (x + 0.044715 * x * x * x)))


def _pick_tile(dim, pref, quantum):
    """Largest power-of-two tile <= pref that divides dim; else the full dim."""
    t = pref
    while t >= quantum:
        if dim % t == 0:
            return t
        t //= 2
    return dim


# -------------------- Pallas kernels --------------------

def _ln_matmul_kernel(*refs, activation, has_context, eps):
    """out = act(LN(x [+ c]) @ W + b).  LN in f32, matmul bf16 on the MXU."""
    if has_context:
        x_ref, c_ref, g_ref, beta_ref, w_ref, b_ref, o_ref = refs
        x = x_ref[...] + c_ref[...]
    else:
        x_ref, g_ref, beta_ref, w_ref, b_ref, o_ref = refs
        x = x_ref[...]
    mean = jnp.mean(x, axis=-1, keepdims=True)
    var = jnp.mean((x - mean) ** 2, axis=-1, keepdims=True)
    h = (x - mean) * lax.rsqrt(var + eps) * g_ref[...] + beta_ref[...]
    y = jnp.dot(h.astype(jnp.bfloat16), w_ref[...],
                preferred_element_type=jnp.float32) + b_ref[...]
    if activation == "gelu":
        y = _gelu(y)
    o_ref[...] = y


def _residual_matmul_kernel(*refs, has_context):
    """out = residual [+ c] + act @ W + b (output aliases the residual buffer)."""
    if has_context:
        a_ref, w_ref, b_ref, r_ref, c_ref, o_ref = refs
    else:
        a_ref, w_ref, b_ref, r_ref, o_ref = refs
    y = jnp.dot(a_ref[...].astype(jnp.bfloat16), w_ref[...],
                preferred_element_type=jnp.float32)
    y = y + b_ref[...] + r_ref[...]
    if has_context:
        y = y + c_ref[...]
    o_ref[...] = y


def _attention_kernel(qkv_ref, mask_ref, o_ref, *, n_heads, scale):
    """All heads for one batch element; writes a single lane-dense (S, H) block."""
    h3 = qkv_ref.shape[-1]
    h = h3 // 3
    dh = h // n_heads
    qkv = qkv_ref[0]             # (S, 3H) f32
    keep = mask_ref[0] > 0.0     # (1, S) key mask, broadcast over query rows
    outs = []
    for hi in range(n_heads):
        q = qkv[:, hi * dh:(hi + 1) * dh].astype(jnp.bfloat16)
        k = qkv[:, h + hi * dh:h + (hi + 1) * dh].astype(jnp.bfloat16)
        v = qkv[:, 2 * h + hi * dh:2 * h + (hi + 1) * dh].astype(jnp.bfloat16)
        # contract on the feature dim directly (no explicit k transpose)
        s = lax.dot_general(q, k, (((1,), (1,)), ((), ())),
                            preferred_element_type=jnp.float32) * scale
        s = jnp.where(keep, s, -1e9)               # masked_fill(mask == 0, -1e9)
        s = s - jnp.max(s, axis=-1, keepdims=True)
        p = jnp.exp(s)
        p = p * pl.reciprocal(jnp.sum(p, axis=-1, keepdims=True), approx=True)
        outs.append(jnp.dot(p.astype(jnp.bfloat16), v,
                            preferred_element_type=jnp.float32))
    o_ref[0] = jnp.concatenate(outs, axis=-1)       # one (S, H) lane-dense store


def _context_ffn_kernel(c_ref, w1_ref, b1_ref, w2_ref, b2_ref, o_ref):
    h = jnp.dot(c_ref[...].astype(jnp.bfloat16), w1_ref[...],
                preferred_element_type=jnp.float32) + b1_ref[...]
    h = _gelu(h)
    o_ref[...] = jnp.dot(h.astype(jnp.bfloat16), w2_ref[...],
                         preferred_element_type=jnp.float32) + b2_ref[...]


# -------------------- pallas_call wrappers --------------------

def ln_matmul(x, gamma, beta, w, b, context=None, activation=None, eps=1e-6):
    n, h = x.shape
    d_out = w.shape[1]
    tm = _pick_tile(n, _ROW_TILE, 8)
    tn = _pick_tile(d_out, _COL_TILE, 128)
    grid = (n // tm, d_out // tn)
    row_spec = pl.BlockSpec((tm, h), lambda i, j: (i, 0))
    vec_spec = pl.BlockSpec((1, h), lambda i, j: (0, 0))
    in_specs = [row_spec]
    args = [x]
    if context is not None:
        in_specs.append(row_spec)
        args.append(context)
    in_specs += [vec_spec, vec_spec,
                 pl.BlockSpec((h, tn), lambda i, j: (0, j)),
                 pl.BlockSpec((1, tn), lambda i, j: (0, j))]
    args += [gamma.reshape(1, h), beta.reshape(1, h), w, b.reshape(1, d_out)]
    return pl.pallas_call(
        partial(_ln_matmul_kernel, activation=activation,
                has_context=context is not None, eps=eps),
        out_shape=jax.ShapeDtypeStruct((n, d_out), jnp.float32),
        grid=grid,
        in_specs=in_specs,
        out_specs=pl.BlockSpec((tm, tn), lambda i, j: (i, j)),
        compiler_params=pltpu.CompilerParams(
            dimension_semantics=("parallel", "parallel")),
    )(*args)


def residual_matmul(act, w, b, residual, context=None):
    n, k = act.shape
    d_out = w.shape[1]
    tm = _pick_tile(n, _ROW_TILE, 8)
    tn = _pick_tile(d_out, _COL_TILE, 128)
    grid = (n // tm, d_out // tn)
    res_spec = pl.BlockSpec((tm, tn), lambda i, j: (i, j))
    in_specs = [pl.BlockSpec((tm, k), lambda i, j: (i, 0)),
                pl.BlockSpec((k, tn), lambda i, j: (0, j)),
                pl.BlockSpec((1, tn), lambda i, j: (0, j)),
                res_spec]
    args = [act, w, b.reshape(1, d_out), residual]
    if context is not None:
        in_specs.append(res_spec)
        args.append(context)
    return pl.pallas_call(
        partial(_residual_matmul_kernel, has_context=context is not None),
        out_shape=jax.ShapeDtypeStruct((n, d_out), jnp.float32),
        grid=grid,
        in_specs=in_specs,
        out_specs=pl.BlockSpec((tm, tn), lambda i, j: (i, j)),
        input_output_aliases={3: 0},     # write straight into the residual buffer
        compiler_params=pltpu.CompilerParams(
            dimension_semantics=("parallel", "parallel")),
    )(*args)


def multihead_attention(qkv, key_mask, n_heads):
    b, s, h3 = qkv.shape
    h = h3 // 3
    dh = h // n_heads
    scale = 1.0 / math.sqrt(dh)
    return pl.pallas_call(
        partial(_attention_kernel, n_heads=n_heads, scale=scale),
        out_shape=jax.ShapeDtypeStruct((b, s, h), jnp.float32),
        grid=(b,),
        in_specs=[
            pl.BlockSpec((1, s, h3), lambda bi: (bi, 0, 0)),
            pl.BlockSpec((1, 1, s), lambda bi: (bi, 0, 0)),
        ],
        out_specs=pl.BlockSpec((1, s, h), lambda bi: (bi, 0, 0)),
        compiler_params=pltpu.CompilerParams(
            dimension_semantics=("parallel",)),
    )(qkv, key_mask)


def context_ffn(c, p):
    b, h = c.shape
    d_ff = p["w1"].shape[1]
    return pl.pallas_call(
        _context_ffn_kernel,
        out_shape=jax.ShapeDtypeStruct((b, h), jnp.float32),
        grid=(1,),
        in_specs=[
            pl.BlockSpec((b, h), lambda i: (0, 0)),
            pl.BlockSpec((h, d_ff), lambda i: (0, 0)),
            pl.BlockSpec((1, d_ff), lambda i: (0, 0)),
            pl.BlockSpec((d_ff, h), lambda i: (0, 0)),
            pl.BlockSpec((1, h), lambda i: (0, 0)),
        ],
        out_specs=pl.BlockSpec((b, h), lambda i: (0, 0)),
    )(c, p["w1"], p["b1"].reshape(1, d_ff), p["w2"], p["b2"].reshape(1, h))


# -------------------- parameters --------------------

def sinusoidal_pos_emb(max_len, d_model):
    pos = jnp.arange(max_len, dtype=jnp.float32)[:, None]
    i = jnp.arange(0, d_model, 2, dtype=jnp.float32)
    div = jnp.exp(i * (-math.log(10000.0) / d_model))
    pe = jnp.zeros((max_len, d_model), dtype=jnp.float32)
    pe = pe.at[:, 0::2].set(jnp.sin(pos * div))
    pe = pe.at[:, 1::2].set(jnp.cos(pos * div))
    return pe


def init_params(key, vocab_size, context_size, hidden, n_layers, attn_heads,
                max_len=128):
    keys = jax.random.split(key, 4 + n_layers)

    def wf32(k, shape):
        return jax.random.normal(k, shape, dtype=jnp.float32) * 0.02

    def wbf16(k, shape):
        return (jax.random.normal(k, shape, dtype=jnp.float32) * 0.02
                ).astype(jnp.bfloat16)

    params = {
        # TokenEmbedding(vocab, hidden, padding_idx=0)
        "tok_emb": wf32(keys[0], (vocab_size, hidden)).at[0].set(0.0),
        "pos_emb": sinusoidal_pos_emb(max_len, hidden),
        # ContextEmbedding(context_size, hidden)
        "ctx_emb": wf32(keys[1], (context_size, hidden)),
        # context_fnn: FeedForward(hidden, 2*hidden)
        "ctx_fnn": {
            "w1": wbf16(keys[2], (hidden, 2 * hidden)),
            "b1": jnp.zeros((2 * hidden,), jnp.float32),
            "w2": wbf16(keys[3], (2 * hidden, hidden)),
            "b2": jnp.zeros((hidden,), jnp.float32),
        },
        "layers": [],
    }
    for l in range(n_layers):
        lk = jax.random.split(keys[4 + l], 4)
        params["layers"].append({
            "ln1_g": jnp.ones((hidden,), jnp.float32),
            "ln1_b": jnp.zeros((hidden,), jnp.float32),
            # fused Q|K|V projection weight [H, 3H]
            "wqkv": wbf16(lk[0], (hidden, 3 * hidden)),
            "bqkv": jnp.zeros((3 * hidden,), jnp.float32),
            "wo": wbf16(lk[1], (hidden, hidden)),
            "bo": jnp.zeros((hidden,), jnp.float32),
            "ln2_g": jnp.ones((hidden,), jnp.float32),
            "ln2_b": jnp.zeros((hidden,), jnp.float32),
            "ff_w1": wbf16(lk[2], (hidden, 4 * hidden)),
            "ff_b1": jnp.zeros((4 * hidden,), jnp.float32),
            "ff_w2": wbf16(lk[3], (4 * hidden, hidden)),
            "ff_b2": jnp.zeros((hidden,), jnp.float32),
        })
    return params


# -------------------- forward --------------------

@partial(jax.jit, static_argnames=("hidden", "attn_heads"))
def context_bert_forward(params, x_ids, c_ids, *, hidden, attn_heads):
    B, S = x_ids.shape
    H = hidden
    N = B * S
    assert params["pos_emb"].shape[0] >= S, "sequence longer than positional table"

    # mask = (x > 0).unsqueeze(1).repeat(1,S,1).unsqueeze(1): only the (B, S)
    # key mask is materialized; the (S, S) broadcast happens inside the kernel.
    key_mask = (x_ids > 0).astype(jnp.float32).reshape(B, 1, S)

    # BERTEmbedding: token + sinusoidal positional embedding (dropout = identity)
    x = jnp.take(params["tok_emb"], x_ids, axis=0) + params["pos_emb"][None, :S, :]
    x2 = x.reshape(N, H).astype(jnp.float32)

    # ContextEmbedding lookup + context FeedForward (GELU MLP) on [B, H]
    c = jnp.take(params["ctx_emb"], c_ids, axis=0)
    c = context_ffn(c, params["ctx_fnn"])
    # context rows broadcast to [N, H]; loop-invariant, hoisted out of the loop
    c_rows = jnp.repeat(c, S, axis=0)

    for lp in params["layers"]:
        # TODO(synk): ContextTransformerBlock internals not provided in the
        # reference; a standard pre-norm BERT block with additive context
        # injection before the attention sublayer is assumed.

        # --- attention sublayer: fused (x + c) -> LN -> QKV projection ---
        qkv = ln_matmul(x2, lp["ln1_g"], lp["ln1_b"], lp["wqkv"], lp["bqkv"],
                        context=c_rows)
        attn = multihead_attention(qkv.reshape(B, S, 3 * H), key_mask,
                                   n_heads=attn_heads)
        attn = attn.reshape(N, H)
        # output projection + bias + residual (x + c), output aliases x2's buffer
        x2 = residual_matmul(attn, lp["wo"], lp["bo"], x2, context=c_rows)

        # --- position-wise feed-forward sublayer (pre-norm + residual) ---
        h = ln_matmul(x2, lp["ln2_g"], lp["ln2_b"], lp["ff_w1"], lp["ff_b1"],
                      activation="gelu")
        x2 = residual_matmul(h, lp["ff_w2"], lp["ff_b2"], x2)

    return x2.reshape(B, S, H)


if __name__ == "__main__":
    vocab_size, context_size = 50, 10
    hidden, n_layers, attn_heads = 32, 2, 4
    B, S = 2, 8

    key = jax.random.PRNGKey(0)
    k_p, k_x, k_c = jax.random.split(key, 3)
    params = init_params(k_p, vocab_size, context_size, hidden, n_layers,
                         attn_heads)

    x_ids = jax.random.randint(k_x, (B, S), 0, vocab_size, dtype=jnp.int32)
    x_ids = x_ids.at[:, -2:].set(0)   # padding tokens so the mask is exercised
    c_ids = jax.random.randint(k_c, (B,), 0, context_size, dtype=jnp.int32)

    out = context_bert_forward(params, x_ids, c_ids,
                               hidden=hidden, attn_heads=attn_heads)
    jax.block_until_ready(out)
    assert out.shape == (B, S, hidden) and out.dtype == jnp.float32
    print("KERNEL_OK")
</pallas_src>

<mosaic_0001>
module attributes {stable_mosaic.version = 11 : i64} {
  func.func @_context_ffn_kernel(%arg0: i32, %arg1: memref<2x32xf32, #tpu.memory_space<vmem>>, %arg2: memref<32x64xbf16, #tpu.memory_space<vmem>>, %arg3: memref<1x64xf32, #tpu.memory_space<vmem>>, %arg4: memref<64x32xbf16, #tpu.memory_space<vmem>>, %arg5: memref<1x32xf32, #tpu.memory_space<vmem>>, %arg6: memref<2x32xf32, #tpu.memory_space<vmem>>) attributes {dimension_semantics = [#tpu.dimension_semantics<arbitrary>], iteration_bounds = array<i64: 1>, scalar_prefetch = 0 : i64, scratch_operands = 0 : i64, tpu.core_type = #tpu.core_type<tc>, window_params = [{pipeline_mode = #tpu.pipeline_mode<synchronous>, transform_indices = @transform_0, window_bounds = array<i64: 2, 32>}, {pipeline_mode = #tpu.pipeline_mode<synchronous>, transform_indices = @transform_1, window_bounds = array<i64: 32, 64>}, {pipeline_mode = #tpu.pipeline_mode<synchronous>, transform_indices = @transform_2, window_bounds = array<i64: 1, 64>}, {pipeline_mode = #tpu.pipeline_mode<synchronous>, transform_indices = @transform_3, window_bounds = array<i64: 64, 32>}, {pipeline_mode = #tpu.pipeline_mode<synchronous>, transform_indices = @transform_4, window_bounds = array<i64: 1, 32>}, {pipeline_mode = #tpu.pipeline_mode<synchronous>, transform_indices = @transform_5, window_bounds = array<i64: 2, 32>}]} {
    %c0 = arith.constant 0 : index
    %c0_0 = arith.constant 0 : index
    %0 = vector.load %arg1[%c0, %c0_0] : memref<2x32xf32, #tpu.memory_space<vmem>>, vector<2x32xf32>
    %1 = arith.truncf %0 : vector<2x32xf32> to vector<2x32xbf16>
    %c0_1 = arith.constant 0 : index
    %c0_2 = arith.constant 0 : index
    %2 = vector.load %arg2[%c0_1, %c0_2] : memref<32x64xbf16, #tpu.memory_space<vmem>>, vector<32x64xbf16>
    %cst = arith.constant dense<0.000000e+00> : vector<2x64xf32>
    %3 = tpu.matmul %1, %2, %cst {dimension_numbers = #tpu.dot_dimension_numbers<[1], [0], [0], [1], [0, 0, 1, 1], [], []>} : vector<2x32xbf16>, vector<32x64xbf16>, vector<2x64xf32> -> vector<2x64xf32>
    %c0_3 = arith.constant 0 : index
    %c0_4 = arith.constant 0 : index
    %4 = vector.load %arg3[%c0_3, %c0_4] : memref<1x64xf32, #tpu.memory_space<vmem>>, vector<1x64xf32>
    %5 = vector.broadcast %4 : vector<1x64xf32> to vector<2x64xf32>
    %6 = arith.addf %3, %5 : vector<2x64xf32>
    %cst_5 = arith.constant 5.000000e-01 : f32
    %7 = vector.broadcast %cst_5 : f32 to vector<2x64xf32>
    %8 = arith.mulf %7, %6 : vector<2x64xf32>
    %cst_6 = arith.constant 4.471500e-02 : f32
    %9 = vector.broadcast %cst_6 : f32 to vector<2x64xf32>
    %10 = arith.mulf %9, %6 : vector<2x64xf32>
    %11 = arith.mulf %10, %6 : vector<2x64xf32>
    %12 = arith.mulf %11, %6 : vector<2x64xf32>
    %13 = arith.addf %6, %12 : vector<2x64xf32>
    %cst_7 = arith.constant 0.797884583 : f32
    %14 = vector.broadcast %cst_7 : f32 to vector<2x64xf32>
    %15 = arith.mulf %14, %13 : vector<2x64xf32>
    %16 = math.tanh %15 : vector<2x64xf32>
    %cst_8 = arith.constant 1.000000e+00 : f32
    %17 = vector.broadcast %cst_8 : f32 to vector<2x64xf32>
    %18 = arith.addf %17, %16 : vector<2x64xf32>
    %19 = arith.mulf %8, %18 : vector<2x64xf32>
    %20 = arith.truncf %19 : vector<2x64xf32> to vector<2x64xbf16>
    %c0_9 = arith.constant 0 : index
    %c0_10 = arith.constant 0 : index
    %21 = vector.load %arg4[%c0_9, %c0_10] : memref<64x32xbf16, #tpu.memory_space<vmem>>, vector<64x32xbf16>
    %cst_11 = arith.constant dense<0.000000e+00> : vector<2x32xf32>
    %22 = tpu.matmul %20, %21, %cst_11 {dimension_numbers = #tpu.dot_dimension_numbers<[1], [0], [0], [1], [0, 0, 1, 1], [], []>} : vector<2x64xbf16>, vector<64x32xbf16>, vector<2x32xf32> -> vector<2x32xf32>
    %c0_12 = arith.constant 0 : index
    %c0_13 = arith.constant 0 : index
    %23 = vector.load %arg5[%c0_12, %c0_13] : memref<1x32xf32, #tpu.memory_space<vmem>>, vector<1x32xf32>
    %24 = vector.broadcast %23 : vector<1x32xf32> to vector<2x32xf32>
    %25 = arith.addf %22, %24 : vector<2x32xf32>
    %c0_14 = arith.constant 0 : index
    %c0_15 = arith.constant 0 : index
    %26 = vector.load %arg6[%c0_14, %c0_15] : memref<2x32xf32, #tpu.memory_space<vmem>>, vector<2x32xf32>
    tpu.vector_store %arg6[%c0_14, %c0_15], %25 {strides = array<i32>} : memref<2x32xf32, #tpu.memory_space<vmem>>, vector<2x32xf32>,
    return
  }
  func.func @transform_0(%arg0: i32) -> (i32, i32) {
    %c0_i32 = arith.constant 0 : i32
    %c0_i32_0 = arith.constant 0 : i32
    %c0_i32_1 = arith.constant 0 : i32
    return %c0_i32, %c0_i32_0 : i32, i32
  }
  func.func @transform_1(%arg0: i32) -> (i32, i32) {
    %c0_i32 = arith.constant 0 : i32
    %c0_i32_0 = arith.constant 0 : i32
    %c0_i32_1 = arith.constant 0 : i32
    return %c0_i32, %c0_i32_0 : i32, i32
  }
  func.func @transform_2(%arg0: i32) -> (i32, i32) {
    %c0_i32 = arith.constant 0 : i32
    %c0_i32_0 = arith.constant 0 : i32
    %c0_i32_1 = arith.constant 0 : i32
    return %c0_i32, %c0_i32_0 : i32, i32
  }
  func.func @transform_3(%arg0: i32) -> (i32, i32) {
    %c0_i32 = arith.constant 0 : i32
    %c0_i32_0 = arith.constant 0 : i32
    %c0_i32_1 = arith.constant 0 : i32
    return %c0_i32, %c0_i32_0 : i32, i32
  }
  func.func @transform_4(%arg0: i32) -> (i32, i32) {
    %c0_i32 = arith.constant 0 : i32
    %c0_i32_0 = arith.constant 0 : i32
    %c0_i32_1 = arith.constant 0 : i32
    return %c0_i32, %c0_i32_0 : i32, i32
  }
  func.func @transform_5(%arg0: i32) -> (i32, i32) {
    %c0_i32 = arith.constant 0 : i32
    %c0_i32_0 = arith.constant 0 : i32
    %c0_i32_1 = arith.constant 0 : i32
    return %c0_i32, %c0_i32_0 : i32, i32
  }
}

module attributes {stable_mosaic.version = 11 : i64} {
  func.func @_ln_matmul_kernel(%arg0: i32, %arg1: i32, %arg2: memref<16x32xf32, #tpu.memory_space<vmem>>, %arg3: memref<16x32xf32, #tpu.memory_space<vmem>>, %arg4: memref<1x32xf32, #tpu.memory_space<vmem>>, %arg5: memref<1x32xf32, #tpu.memory_space<vmem>>, %arg6: memref<32x96xbf16, #tpu.memory_space<vmem>>, %arg7: memref<1x96xf32, #tpu.memory_space<vmem>>, %arg8: memref<16x96xf32, #tpu.memory_space<vmem>>) attributes {dimension_semantics = [#tpu.dimension_semantics<parallel>, #tpu.dimension_semantics<parallel>], iteration_bounds = array<i64: 1, 1>, scalar_prefetch = 0 : i64, scratch_operands = 0 : i64, tpu.core_type = #tpu.core_type<tc>, window_params = [{transform_indices = @transform_0, window_bounds = array<i64: 16, 32>}, {transform_indices = @transform_1, window_bounds = array<i64: 16, 32>}, {pipeline_mode = #tpu.pipeline_mode<synchronous>, transform_indices = @transform_2, window_bounds = array<i64: 1, 32>}, {pipeline_mode = #tpu.pipeline_mode<synchronous>, transform_indices = @transform_3, window_bounds = array<i64: 1, 32>}, {transform_indices = @transform_4, window_bounds = array<i64: 32, 96>}, {transform_indices = @transform_5, window_bounds = array<i64: 1, 96>}, {transform_indices = @transform_6, window_bounds = array<i64: 16, 96>}]} {
    %c0 = arith.constant 0 : index
    %c0_0 = arith.constant 0 : index
    %0 = vector.load %arg2[%c0, %c0_0] : memref<16x32xf32, #tpu.memory_space<vmem>>, vector<16x32xf32>
    %c0_1 = arith.constant 0 : index
    %c0_2 = arith.constant 0 : index
    %1 = vector.load %arg3[%c0_1, %c0_2] : memref<16x32xf32, #tpu.memory_space<vmem>>, vector<16x32xf32>
    %2 = arith.addf %0, %1 : vector<16x32xf32>
    %cst = arith.constant dense<0.000000e+00> : vector<16xf32>
    %3 = vector.multi_reduction <add>, %2, %cst [1] : vector<16x32xf32> to vector<16xf32>
    %4 = vector.shape_cast %3 : vector<16xf32> to vector<16x1xf32>
    %cst_3 = arith.constant 3.200000e+01 : f32
    %5 = vector.broadcast %cst_3 : f32 to vector<16x1xf32>
    %6 = arith.divf %4, %5 : vector<16x1xf32>
    %7 = vector.broadcast %6 : vector<16x1xf32> to vector<16x32xf32>
    %8 = arith.subf %2, %7 : vector<16x32xf32>
    %9 = arith.mulf %8, %8 : vector<16x32xf32>
    %cst_4 = arith.constant dense<0.000000e+00> : vector<16xf32>
    %10 = vector.multi_reduction <add>, %9, %cst_4 [1] : vector<16x32xf32> to vector<16xf32>
    %11 = vector.shape_cast %10 : vector<16xf32> to vector<16x1xf32>
    %cst_5 = arith.constant 3.200000e+01 : f32
    %12 = vector.broadcast %cst_5 : f32 to vector<16x1xf32>
    %13 = arith.divf %11, %12 : vector<16x1xf32>
    %14 = vector.broadcast %6 : vector<16x1xf32> to vector<16x32xf32>
    %15 = arith.subf %2, %14 : vector<16x32xf32>
    %cst_6 = arith.constant 9.99999997E-7 : f32
    %16 = vector.broadcast %cst_6 : f32 to vector<16x1xf32>
    %17 = arith.addf %13, %16 : vector<16x1xf32>
    %18 = math.rsqrt %17 : vector<16x1xf32>
    %19 = vector.broadcast %18 : vector<16x1xf32> to vector<16x32xf32>
    %20 = arith.mulf %15, %19 : vector<16x32xf32>
    %c0_7 = arith.constant 0 : index
    %c0_8 = arith.constant 0 : index
    %21 = vector.load %arg4[%c0_7, %c0_8] : memref<1x32xf32, #tpu.memory_space<vmem>>, vector<1x32xf32>
    %22 = vector.broadcast %21 : vector<1x32xf32> to vector<16x32xf32>
    %23 = arith.mulf %20, %22 : vector<16x32xf32>
    %c0_9 = arith.constant 0 : index
    %c0_10 = arith.constant 0 : index
    %24 = vector.load %arg5[%c0_9, %c0_10] : memref<1x32xf32, #tpu.memory_space<vmem>>, vector<1x32xf32>
    %25 = vector.broadcast %24 : vector<1x32xf32> to vector<16x32xf32>
    %26 = arith.addf %23, %25 : vector<16x32xf32>
    %27 = arith.truncf %26 : vector<16x32xf32> to vector<16x32xbf16>
    %c0_11 = arith.constant 0 : index
    %c0_12 = arith.constant 0 : index
    %28 = vector.load %arg6[%c0_11, %c0_12] : memref<32x96xbf16, #tpu.memory_space<vmem>>, vector<32x96xbf16>
    %cst_13 = arith.constant dense<0.000000e+00> : vector<16x96xf32>
    %29 = tpu.matmul %27, %28, %cst_13 {dimension_numbers = #tpu.dot_dimension_numbers<[1], [0], [0], [1], [0, 0, 1, 1], [], []>} : vector<16x32xbf16>, vector<32x96xbf16>, vector<16x96xf32> -> vector<16x96xf32>
    %c0_14 = arith.constant 0 : index
    %c0_15 = arith.constant 0 : index
    %30 = vector.load %arg7[%c0_14, %c0_15] : memref<1x96xf32, #tpu.memory_space<vmem>>, vector<1x96xf32>
    %31 = vector.broadcast %30 : vector<1x96xf32> to vector<16x96xf32>
    %32 = arith.addf %29, %31 : vector<16x96xf32>
    %c0_16 = arith.constant 0 : index
    %c0_17 = arith.constant 0 : index
    %33 = vector.load %arg8[%c0_16, %c0_17] : memref<16x96xf32, #tpu.memory_space<vmem>>, vector<16x96xf32>
    tpu.vector_store %arg8[%c0_16, %c0_17], %32 {strides = array<i32>} : memref<16x96xf32, #tpu.memory_space<vmem>>, vector<16x96xf32>,
    return
  }
  func.func @transform_0(%arg0: i32, %arg1: i32) -> (i32, i32) {
    %c0_i32 = arith.constant 0 : i32
    %c0_i32_0 = arith.constant 0 : i32
    return %arg0, %c0_i32 : i32, i32
  }
  func.func @transform_1(%arg0: i32, %arg1: i32) -> (i32, i32) {
    %c0_i32 = arith.constant 0 : i32
    %c0_i32_0 = arith.constant 0 : i32
    return %arg0, %c0_i32 : i32, i32
  }
  func.func @transform_2(%arg0: i32, %arg1: i32) -> (i32, i32) {
    %c0_i32 = arith.constant 0 : i32
    %c0_i32_0 = arith.constant 0 : i32
    %c0_i32_1 = arith.constant 0 : i32
    return %c0_i32, %c0_i32_0 : i32, i32
  }
  func.func @transform_3(%arg0: i32, %arg1: i32) -> (i32, i32) {
    %c0_i32 = arith.constant 0 : i32
    %c0_i32_0 = arith.constant 0 : i32
    %c0_i32_1 = arith.constant 0 : i32
    return %c0_i32, %c0_i32_0 : i32, i32
  }
  func.func @transform_4(%arg0: i32, %arg1: i32) -> (i32, i32) {
    %c0_i32 = arith.constant 0 : i32
    %c0_i32_0 = arith.constant 0 : i32
    return %c0_i32, %arg1 : i32, i32
  }
  func.func @transform_5(%arg0: i32, %arg1: i32) -> (i32, i32) {
    %c0_i32 = arith.constant 0 : i32
    %c0_i32_0 = arith.constant 0 : i32
    return %c0_i32, %arg1 : i32, i32
  }
  func.func @transform_6(%arg0: i32, %arg1: i32) -> (i32, i32) {
    %c0_i32 = arith.constant 0 : i32
    return %arg0, %arg1 : i32, i32
  }
}

module attributes {stable_mosaic.version = 11 : i64} {
  func.func @_attention_kernel(%arg0: i32, %arg1: memref<1x8x96xf32, #tpu.memory_space<vmem>>, %arg2: memref<1x1x8xf32, #tpu.memory_space<vmem>>, %arg3: memref<1x8x32xf32, #tpu.memory_space<vmem>>) attributes {dimension_semantics = [#tpu.dimension_semantics<parallel>], iteration_bounds = array<i64: 2>, scalar_prefetch = 0 : i64, scratch_operands = 0 : i64, tpu.core_type = #tpu.core_type<tc>, window_params = [{transform_indices = @transform_0, window_bounds = array<i64: 1, 8, 96>}, {transform_indices = @transform_1, window_bounds = array<i64: 1, 1, 8>}, {transform_indices = @transform_2, window_bounds = array<i64: 1, 8, 32>}]} {
    %c0 = arith.constant 0 : index
    %c0_0 = arith.constant 0 : index
    %c0_1 = arith.constant 0 : index
    %0 = vector.load %arg1[%c0, %c0_0, %c0_1] : memref<1x8x96xf32, #tpu.memory_space<vmem>>, vector<1x8x96xf32>
    %1 = vector.shape_cast %0 : vector<1x8x96xf32> to vector<8x96xf32>
    %c0_2 = arith.constant 0 : index
    %c0_3 = arith.constant 0 : index
    %c0_4 = arith.constant 0 : index
    %2 = vector.load %arg2[%c0_2, %c0_3, %c0_4] : memref<1x1x8xf32, #tpu.memory_space<vmem>>, vector<1x1x8xf32>
    %3 = vector.shape_cast %2 : vector<1x1x8xf32> to vector<1x8xf32>
    %cst = arith.constant 0.000000e+00 : f32
    %4 = vector.broadcast %cst : f32 to vector<1x8xf32>
    %5 = arith.cmpf ogt, %3, %4 : vector<1x8xf32>
    %6 = vector.extract_strided_slice %1 {offsets = [0, 0], sizes = [8, 8], strides = [1, 1]} : vector<8x96xf32> to vector<8x8xf32>
    %7 = arith.truncf %6 : vector<8x8xf32> to vector<8x8xbf16>
    %8 = vector.extract_strided_slice %1 {offsets = [0, 32], sizes = [8, 8], strides = [1, 1]} : vector<8x96xf32> to vector<8x8xf32>
    %9 = arith.truncf %8 : vector<8x8xf32> to vector<8x8xbf16>
    %10 = vector.extract_strided_slice %1 {offsets = [0, 64], sizes = [8, 8], strides = [1, 1]} : vector<8x96xf32> to vector<8x8xf32>
    %11 = arith.truncf %10 : vector<8x8xf32> to vector<8x8xbf16>
    %cst_5 = arith.constant dense<0.000000e+00> : vector<8x8xf32>
    %12 = tpu.matmul %7, %9, %cst_5 {dimension_numbers = #tpu.dot_dimension_numbers<[1], [1], [0], [0], [0, 0, 1, 0], [], []>} : vector<8x8xbf16>, vector<8x8xbf16>, vector<8x8xf32> -> vector<8x8xf32>
    %cst_6 = arith.constant 0.353553385 : f32
    %13 = vector.broadcast %cst_6 : f32 to vector<8x8xf32>
    %14 = arith.mulf %12, %13 : vector<8x8xf32>
    %cst_7 = arith.constant -1.000000e+09 : f32
    %15 = vector.shape_cast %5 : vector<1x8xi1> to vector<1x8xi1>
    %16 = vector.broadcast %15 : vector<1x8xi1> to vector<8x8xi1>
    %17 = vector.broadcast %cst_7 : f32 to vector<8x8xf32>
    %18 = arith.select %16, %14, %17 : vector<8x8xi1>, vector<8x8xf32>
    %cst_8 = arith.constant dense<0xFF800000> : vector<8xf32>
    %19 = vector.multi_reduction <maximumf>, %18, %cst_8 [1] : vector<8x8xf32> to vector<8xf32>
    %20 = vector.shape_cast %19 : vector<8xf32> to vector<8x1xf32>
    %21 = vector.broadcast %20 : vector<8x1xf32> to vector<8x8xf32>
    %22 = arith.subf %18, %21 : vector<8x8xf32>
    %23 = math.exp %22 : vector<8x8xf32>
    %cst_9 = arith.constant dense<0.000000e+00> : vector<8xf32>
    %24 = vector.multi_reduction <add>, %23, %cst_9 [1] : vector<8x8xf32> to vector<8xf32>
    %25 = vector.shape_cast %24 : vector<8xf32> to vector<8x1xf32>
    %26 = tpu.reciprocal %25 {approx = true} : vector<8x1xf32> -> vector<8x1xf32>
    %27 = vector.broadcast %26 : vector<8x1xf32> to vector<8x8xf32>
    %28 = arith.mulf %23, %27 : vector<8x8xf32>
    %29 = arith.truncf %28 : vector<8x8xf32> to vector<8x8xbf16>
    %cst_10 = arith.constant dense<0.000000e+00> : vector<8x8xf32>
    %30 = tpu.matmul %29, %11, %cst_10 {dimension_numbers = #tpu.dot_dimension_numbers<[1], [0], [0], [1], [0, 0, 1, 1], [], []>} : vector<8x8xbf16>, vector<8x8xbf16>, vector<8x8xf32> -> vector<8x8xf32>
    %31 = vector.extract_strided_slice %1 {offsets = [0, 8], sizes = [8, 8], strides = [1, 1]} : vector<8x96xf32> to vector<8x8xf32>
    %32 = arith.truncf %31 : vector<8x8xf32> to vector<8x8xbf16>
    %33 = vector.extract_strided_slice %1 {offsets = [0, 40], sizes = [8, 8], strides = [1, 1]} : vector<8x96xf32> to vector<8x8xf32>
    %34 = arith.truncf %33 : vector<8x8xf32> to vector<8x8xbf16>
    %35 = vector.extract_strided_slice %1 {offsets = [0, 72], sizes = [8, 8], strides = [1, 1]} : vector<8x96xf32> to vector<8x8xf32>
    %36 = arith.truncf %35 : vector<8x8xf32> to vector<8x8xbf16>
    %cst_11 = arith.constant dense<0.000000e+00> : vector<8x8xf32>
    %37 = tpu.matmul %32, %34, %cst_11 {dimension_numbers = #tpu.dot_dimension_numbers<[1], [1], [0], [0], [0, 0, 1, 0], [], []>} : vector<8x8xbf16>, vector<8x8xbf16>, vector<8x8xf32> -> vector<8x8xf32>
    %cst_12 = arith.constant 0.353553385 : f32
    %38 = vector.broadcast %cst_12 : f32 to vector<8x8xf32>
    %39 = arith.mulf %37, %38 : vector<8x8xf32>
    %cst_13 = arith.constant -1.000000e+09 : f32
    %40 = vector.shape_cast %5 : vector<1x8xi1> to vector<1x8xi1>
    %41 = vector.broadcast %40 : vector<1x8xi1> to vector<8x8xi1>
    %42 = vector.broadcast %cst_13 : f32 to vector<8x8xf32>
    %43 = arith.select %41, %39, %42 : vector<8x8xi1>, vector<8x8xf32>
    %cst_14 = arith.constant dense<0xFF800000> : vector<8xf32>
    %44 = vector.multi_reduction <maximumf>, %43, %cst_14 [1] : vector<8x8xf32> to vector<8xf32>
    %45 = vector.shape_cast %44 : vector<8xf32> to vector<8x1xf32>
    %46 = vector.broadcast %45 : vector<8x1xf32> to vector<8x8xf32>
    %47 = arith.subf %43, %46 : vector<8x8xf32>
    %48 = math.exp %47 : vector<8x8xf32>
    %cst_15 = arith.constant dense<0.000000e+00> : vector<8xf32>
    %49 = vector.multi_reduction <add>, %48, %cst_15 [1] : vector<8x8xf32> to vector<8xf32>
    %50 = vector.shape_cast %49 : vector<8xf32> to vector<8x1xf32>
    %51 = tpu.reciprocal %50 {approx = true} : vector<8x1xf32> -> vector<8x1xf32>
    %52 = vector.broadcast %51 : vector<8x1xf32> to vector<8x8xf32>
    %53 = arith.mulf %48, %52 : vector<8x8xf32>
    %54 = arith.truncf %53 : vector<8x8xf32> to vector<8x8xbf16>
    %cst_16 = arith.constant dense<0.000000e+00> : vector<8x8xf32>
    %55 = tpu.matmul %54, %36, %cst_16 {dimension_numbers = #tpu.dot_dimension_numbers<[1], [0], [0], [1], [0, 0, 1, 1], [], []>} : vector<8x8xbf16>, vector<8x8xbf16>, vector<8x8xf32> -> vector<8x8xf32>
    %56 = vector.extract_strided_slice %1 {offsets = [0, 16], sizes = [8, 8], strides = [1, 1]} : vector<8x96xf32> to vector<8x8xf32>
    %57 = arith.truncf %56 : vector<8x8xf32> to vector<8x8xbf16>
    %58 = vector.extract_strided_slice %1 {offsets = [0, 48], sizes = [8, 8], strides = [1, 1]} : vector<8x96xf32> to vector<8x8xf32>
    %59 = arith.truncf %58 : vector<8x8xf32> to vector<8x8xbf16>
    %60 = vector.extract_strided_slice %1 {offsets = [0, 80], sizes = [8, 8], strides = [1, 1]} : vector<8x96xf32> to vector<8x8xf32>
    %61 = arith.truncf %60 : vector<8x8xf32> to vector<8x8xbf16>
    %cst_17 = arith.constant dense<0.000000e+00> : vector<8x8xf32>
    %62 = tpu.matmul %57, %59, %cst_17 {dimension_numbers = #tpu.dot_dimension_numbers<[1], [1], [0], [0], [0, 0, 1, 0], [], []>} : vector<8x8xbf16>, vector<8x8xbf16>, vector<8x8xf32> -> vector<8x8xf32>
    %cst_18 = arith.constant 0.353553385 : f32
    %63 = vector.broadcast %cst_18 : f32 to vector<8x8xf32>
    %64 = arith.mulf %62, %63 : vector<8x8xf32>
    %cst_19 = arith.constant -1.000000e+09 : f32
    %65 = vector.shape_cast %5 : vector<1x8xi1> to vector<1x8xi1>
    %66 = vector.broadcast %65 : vector<1x8xi1> to vector<8x8xi1>
    %67 = vector.broadcast %cst_19 : f32 to vector<8x8xf32>
    %68 = arith.select %66, %64, %67 : vector<8x8xi1>, vector<8x8xf32>
    %cst_20 = arith.constant dense<0xFF800000> : vector<8xf32>
    %69 = vector.multi_reduction <maximumf>, %68, %cst_20 [1] : vector<8x8xf32> to vector<8xf32>
    %70 = vector.shape_cast %69 : vector<8xf32> to vector<8x1xf32>
    %71 = vector.broadcast %70 : vector<8x1xf32> to vector<8x8xf32>
    %72 = arith.subf %68, %71 : vector<8x8xf32>
    %73 = math.exp %72 : vector<8x8xf32>
    %cst_21 = arith.constant dense<0.000000e+00> : vector<8xf32>
    %74 = vector.multi_reduction <add>, %73, %cst_21 [1] : vector<8x8xf32> to vector<8xf32>
    %75 = vector.shape_cast %74 : vector<8xf32> to vector<8x1xf32>
    %76 = tpu.reciprocal %75 {approx = true} : vector<8x1xf32> -> vector<8x1xf32>
    %77 = vector.broadcast %76 : vector<8x1xf32> to vector<8x8xf32>
    %78 = arith.mulf %73, %77 : vector<8x8xf32>
    %79 = arith.truncf %78 : vector<8x8xf32> to vector<8x8xbf16>
    %cst_22 = arith.constant dense<0.000000e+00> : vector<8x8xf32>
    %80 = tpu.matmul %79, %61, %cst_22 {dimension_numbers = #tpu.dot_dimension_numbers<[1], [0], [0], [1], [0, 0, 1, 1], [], []>} : vector<8x8xbf16>, vector<8x8xbf16>, vector<8x8xf32> -> vector<8x8xf32>
    %81 = vector.extract_strided_slice %1 {offsets = [0, 24], sizes = [8, 8], strides = [1, 1]} : vector<8x96xf32> to vector<8x8xf32>
    %82 = arith.truncf %81 : vector<8x8xf32> to vector<8x8xbf16>
    %83 = vector.extract_strided_slice %1 {offsets = [0, 56], sizes = [8, 8], strides = [1, 1]} : vector<8x96xf32> to vector<8x8xf32>
    %84 = arith.truncf %83 : vector<8x8xf32> to vector<8x8xbf16>
    %85 = vector.extract_strided_slice %1 {offsets = [0, 88], sizes = [8, 8], strides = [1, 1]} : vector<8x96xf32> to vector<8x8xf32>
    %86 = arith.truncf %85 : vector<8x8xf32> to vector<8x8xbf16>
    %cst_23 = arith.constant dense<0.000000e+00> : vector<8x8xf32>
    %87 = tpu.matmul %82, %84, %cst_23 {dimension_numbers = #tpu.dot_dimension_numbers<[1], [1], [0], [0], [0, 0, 1, 0], [], []>} : vector<8x8xbf16>, vector<8x8xbf16>, vector<8x8xf32> -> vector<8x8xf32>
    %cst_24 = arith.constant 0.353553385 : f32
    %88 = vector.broadcast %cst_24 : f32 to vector<8x8xf32>
    %89 = arith.mulf %87, %88 : vector<8x8xf32>
    %cst_25 = arith.constant -1.000000e+09 : f32
    %90 = vector.shape_cast %5 : vector<1x8xi1> to vector<1x8xi1>
    %91 = vector.broadcast %90 : vector<1x8xi1> to vector<8x8xi1>
    %92 = vector.broadcast %cst_25 : f32 to vector<8x8xf32>
    %93 = arith.select %91, %89, %92 : vector<8x8xi1>, vector<8x8xf32>
    %cst_26 = arith.constant dense<0xFF800000> : vector<8xf32>
    %94 = vector.multi_reduction <maximumf>, %93, %cst_26 [1] : vector<8x8xf32> to vector<8xf32>
    %95 = vector.shape_cast %94 : vector<8xf32> to vector<8x1xf32>
    %96 = vector.broadcast %95 : vector<8x1xf32> to vector<8x8xf32>
    %97 = arith.subf %93, %96 : vector<8x8xf32>
    %98 = math.exp %97 : vector<8x8xf32>
    %cst_27 = arith.constant dense<0.000000e+00> : vector<8xf32>
    %99 = vector.multi_reduction <add>, %98, %cst_27 [1] : vector<8x8xf32> to vector<8xf32>
    %100 = vector.shape_cast %99 : vector<8xf32> to vector<8x1xf32>
    %101 = tpu.reciprocal %100 {approx = true} : vector<8x1xf32> -> vector<8x1xf32>
    %102 = vector.broadcast %101 : vector<8x1xf32> to vector<8x8xf32>
    %103 = arith.mulf %98, %102 : vector<8x8xf32>
    %104 = arith.truncf %103 : vector<8x8xf32> to vector<8x8xbf16>
    %cst_28 = arith.constant dense<0.000000e+00> : vector<8x8xf32>
    %105 = tpu.matmul %104, %86, %cst_28 {dimension_numbers = #tpu.dot_dimension_numbers<[1], [0], [0], [1], [0, 0, 1, 1], [], []>} : vector<8x8xbf16>, vector<8x8xbf16>, vector<8x8xf32> -> vector<8x8xf32>
    %106 = tpu.concatenate %30, %55, %80, %105 in 1 : vector<8x8xf32>, vector<8x8xf32>, vector<8x8xf32>, vector<8x8xf32> -> vector<8x32xf32>
    %c0_29 = arith.constant 0 : index
    %c0_30 = arith.constant 0 : index
    %c0_31 = arith.constant 0 : index
    %107 = vector.load %arg3[%c0_29, %c0_30, %c0_31] : memref<1x8x32xf32, #tpu.memory_space<vmem>>, vector<1x8x32xf32>
    %108 = vector.shape_cast %107 : vector<1x8x32xf32> to vector<8x32xf32>
    %109 = vector.shape_cast %106 : vector<8x32xf32> to vector<1x8x32xf32>
    tpu.vector_store %arg3[%c0_29, %c0_30, %c0_31], %109 {strides = array<i32>} : memref<1x8x32xf32, #tpu.memory_space<vmem>>, vector<1x8x32xf32>,
    return
  }
  func.func @transform_0(%arg0: i32) -> (i32, i32, i32) {
    %c0_i32 = arith.constant 0 : i32
    %c0_i32_0 = arith.constant 0 : i32
    %c0_i32_1 = arith.constant 0 : i32
    return %arg0, %c0_i32, %c0_i32_0 : i32, i32, i32
  }
  func.func @transform_1(%arg0: i32) -> (i32, i32, i32) {
    %c0_i32 = arith.constant 0 : i32
    %c0_i32_0 = arith.constant 0 : i32
    %c0_i32_1 = arith.constant 0 : i32
    return %arg0, %c0_i32, %c0_i32_0 : i32, i32, i32
  }
  func.func @transform_2(%arg0: i32) -> (i32, i32, i32) {
    %c0_i32 = arith.constant 0 : i32
    %c0_i32_0 = arith.constant 0 : i32
    %c0_i32_1 = arith.constant 0 : i32
    return %arg0, %c0_i32, %c0_i32_0 : i32, i32, i32
  }
}

module attributes {stable_mosaic.version = 11 : i64} {
  func.func @_residual_matmul_kernel(%arg0: i32, %arg1: i32, %arg2: memref<16x32xf32, #tpu.memory_space<vmem>>, %arg3: memref<32x32xbf16, #tpu.memory_space<vmem>>, %arg4: memref<1x32xf32, #tpu.memory_space<vmem>>, %arg5: memref<16x32xf32, #tpu.memory_space<vmem>>, %arg6: memref<16x32xf32, #tpu.memory_space<vmem>>, %arg7: memref<16x32xf32, #tpu.memory_space<vmem>>) attributes {dimension_semantics = [#tpu.dimension_semantics<parallel>, #tpu.dimension_semantics<parallel>], iteration_bounds = array<i64: 1, 1>, scalar_prefetch = 0 : i64, scratch_operands = 0 : i64, tpu.core_type = #tpu.core_type<tc>, window_params = [{transform_indices = @transform_0, window_bounds = array<i64: 16, 32>}, {transform_indices = @transform_1, window_bounds = array<i64: 32, 32>}, {transform_indices = @transform_2, window_bounds = array<i64: 1, 32>}, {transform_indices = @transform_3, window_bounds = array<i64: 16, 32>}, {transform_indices = @transform_4, window_bounds = array<i64: 16, 32>}, {transform_indices = @transform_5, window_bounds = array<i64: 16, 32>}]} {
    %c0 = arith.constant 0 : index
    %c0_0 = arith.constant 0 : index
    %0 = vector.load %arg2[%c0, %c0_0] : memref<16x32xf32, #tpu.memory_space<vmem>>, vector<16x32xf32>
    %1 = arith.truncf %0 : vector<16x32xf32> to vector<16x32xbf16>
    %c0_1 = arith.constant 0 : index
    %c0_2 = arith.constant 0 : index
    %2 = vector.load %arg3[%c0_1, %c0_2] : memref<32x32xbf16, #tpu.memory_space<vmem>>, vector<32x32xbf16>
    %cst = arith.constant dense<0.000000e+00> : vector<16x32xf32>
    %3 = tpu.matmul %1, %2, %cst {dimension_numbers = #tpu.dot_dimension_numbers<[1], [0], [0], [1], [0, 0, 1, 1], [], []>} : vector<16x32xbf16>, vector<32x32xbf16>, vector<16x32xf32> -> vector<16x32xf32>
    %c0_3 = arith.constant 0 : index
    %c0_4 = arith.constant 0 : index
    %4 = vector.load %arg4[%c0_3, %c0_4] : memref<1x32xf32, #tpu.memory_space<vmem>>, vector<1x32xf32>
    %5 = vector.broadcast %4 : vector<1x32xf32> to vector<16x32xf32>
    %6 = arith.addf %3, %5 : vector<16x32xf32>
    %c0_5 = arith.constant 0 : index
    %c0_6 = arith.constant 0 : index
    %7 = vector.load %arg5[%c0_5, %c0_6] : memref<16x32xf32, #tpu.memory_space<vmem>>, vector<16x32xf32>
    %8 = arith.addf %6, %7 : vector<16x32xf32>
    %c0_7 = arith.constant 0 : index
    %c0_8 = arith.constant 0 : index
    %9 = vector.load %arg6[%c0_7, %c0_8] : memref<16x32xf32, #tpu.memory_space<vmem>>, vector<16x32xf32>
    %10 = arith.addf %8, %9 : vector<16x32xf32>
    %c0_9 = arith.constant 0 : index
    %c0_10 = arith.constant 0 : index
    %11 = vector.load %arg7[%c0_9, %c0_10] : memref<16x32xf32, #tpu.memory_space<vmem>>, vector<16x32xf32>
    tpu.vector_store %arg7[%c0_9, %c0_10], %10 {strides = array<i32>} : memref<16x32xf32, #tpu.memory_space<vmem>>, vector<16x32xf32>,
    return
  }
  func.func @transform_0(%arg0: i32, %arg1: i32) -> (i32, i32) {
    %c0_i32 = arith.constant 0 : i32
    %c0_i32_0 = arith.constant 0 : i32
    return %arg0, %c0_i32 : i32, i32
  }
  func.func @transform_1(%arg0: i32, %arg1: i32) -> (i32, i32) {
    %c0_i32 = arith.constant 0 : i32
    %c0_i32_0 = arith.constant 0 : i32
    return %c0_i32, %arg1 : i32, i32
  }
  func.func @transform_2(%arg0: i32, %arg1: i32) -> (i32, i32) {
    %c0_i32 = arith.constant 0 : i32
    %c0_i32_0 = arith.constant 0 : i32
    return %c0_i32, %arg1 : i32, i32
  }
  func.func @transform_3(%arg0: i32, %arg1: i32) -> (i32, i32) {
    %c0_i32 = arith.constant 0 : i32
    return %arg0, %arg1 : i32, i32
  }
  func.func @transform_4(%arg0: i32, %arg1: i32) -> (i32, i32) {
    %c0_i32 = arith.constant 0 : i32
    return %arg0, %arg1 : i32, i32
  }
  func.func @transform_5(%arg0: i32, %arg1: i32) -> (i32, i32) {
    %c0_i32 = arith.constant 0 : i32
    return %arg0, %arg1 : i32, i32
  }
}

module attributes {stable_mosaic.version = 11 : i64} {
  func.func @_residual_matmul_kernel(%arg0: i32, %arg1: i32, %arg2: memref<16x128xf32, #tpu.memory_space<vmem>>, %arg3: memref<128x32xbf16, #tpu.memory_space<vmem>>, %arg4: memref<1x32xf32, #tpu.memory_space<vmem>>, %arg5: memref<16x32xf32, #tpu.memory_space<vmem>>, %arg6: memref<16x32xf32, #tpu.memory_space<vmem>>) attributes {dimension_semantics = [#tpu.dimension_semantics<parallel>, #tpu.dimension_semantics<parallel>], iteration_bounds = array<i64: 1, 1>, scalar_prefetch = 0 : i64, scratch_operands = 0 : i64, tpu.core_type = #tpu.core_type<tc>, window_params = [{transform_indices = @transform_0, window_bounds = array<i64: 16, 128>}, {transform_indices = @transform_1, window_bounds = array<i64: 128, 32>}, {transform_indices = @transform_2, window_bounds = array<i64: 1, 32>}, {transform_indices = @transform_3, window_bounds = array<i64: 16, 32>}, {transform_indices = @transform_4, window_bounds = array<i64: 16, 32>}]} {
    %c0 = arith.constant 0 : index
    %c0_0 = arith.constant 0 : index
    %0 = vector.load %arg2[%c0, %c0_0] : memref<16x128xf32, #tpu.memory_space<vmem>>, vector<16x128xf32>
    %1 = arith.truncf %0 : vector<16x128xf32> to vector<16x128xbf16>
    %c0_1 = arith.constant 0 : index
    %c0_2 = arith.constant 0 : index
    %2 = vector.load %arg3[%c0_1, %c0_2] : memref<128x32xbf16, #tpu.memory_space<vmem>>, vector<128x32xbf16>
    %cst = arith.constant dense<0.000000e+00> : vector<16x32xf32>
    %3 = tpu.matmul %1, %2, %cst {dimension_numbers = #tpu.dot_dimension_numbers<[1], [0], [0], [1], [0, 0, 1, 1], [], []>} : vector<16x128xbf16>, vector<128x32xbf16>, vector<16x32xf32> -> vector<16x32xf32>
    %c0_3 = arith.constant 0 : index
    %c0_4 = arith.constant 0 : index
    %4 = vector.load %arg4[%c0_3, %c0_4] : memref<1x32xf32, #tpu.memory_space<vmem>>, vector<1x32xf32>
    %5 = vector.broadcast %4 : vector<1x32xf32> to vector<16x32xf32>
    %6 = arith.addf %3, %5 : vector<16x32xf32>
    %c0_5 = arith.constant 0 : index
    %c0_6 = arith.constant 0 : index
    %7 = vector.load %arg5[%c0_5, %c0_6] : memref<16x32xf32, #tpu.memory_space<vmem>>, vector<16x32xf32>
    %8 = arith.addf %6, %7 : vector<16x32xf32>
    %c0_7 = arith.constant 0 : index
    %c0_8 = arith.constant 0 : index
    %9 = vector.load %arg6[%c0_7, %c0_8] : memref<16x32xf32, #tpu.memory_space<vmem>>, vector<16x32xf32>
    tpu.vector_store %arg6[%c0_7, %c0_8], %8 {strides = array<i32>} : memref<16x32xf32, #tpu.memory_space<vmem>>, vector<16x32xf32>,
    return
  }
  func.func @transform_0(%arg0: i32, %arg1: i32) -> (i32, i32) {
    %c0_i32 = arith.constant 0 : i32
    %c0_i32_0 = arith.constant 0 : i32
    return %arg0, %c0_i32 : i32, i32
  }
  func.func @transform_1(%arg0: i32, %arg1: i32) -> (i32, i32) {
    %c0_i32 = arith.constant 0 : i32
    %c0_i32_0 = arith.constant 0 : i32
    return %c0_i32, %arg1 : i32, i32
  }
  func.func @transform_2(%arg0: i32, %arg1: i32) -> (i32, i32) {
    %c0_i32 = arith.constant 0 : i32
    %c0_i32_0 = arith.constant 0 : i32
    return %c0_i32, %arg1 : i32, i32
  }
  func.func @transform_3(%arg0: i32, %arg1: i32) -> (i32, i32) {
    %c0_i32 = arith.constant 0 : i32
    return %arg0, %arg1 : i32, i32
  }
  func.func @transform_4(%arg0: i32, %arg1: i32) -> (i32, i32) {
    %c0_i32 = arith.constant 0 : i32
    return %arg0, %arg1 : i32, i32
  }
}

module attributes {stable_mosaic.version = 11 : i64} {
  func.func @_ln_matmul_kernel(%arg0: i32, %arg1: i32, %arg2: memref<16x32xf32, #tpu.memory_space<vmem>>, %arg3: memref<1x32xf32, #tpu.memory_space<vmem>>, %arg4: memref<1x32xf32, #tpu.memory_space<vmem>>, %arg5: memref<32x128xbf16, #tpu.memory_space<vmem>>, %arg6: memref<1x128xf32, #tpu.memory_space<vmem>>, %arg7: memref<16x128xf32, #tpu.memory_space<vmem>>) attributes {dimension_semantics = [#tpu.dimension_semantics<parallel>, #tpu.dimension_semantics<parallel>], iteration_bounds = array<i64: 1, 1>, scalar_prefetch = 0 : i64, scratch_operands = 0 : i64, tpu.core_type = #tpu.core_type<tc>, window_params = [{transform_indices = @transform_0, window_bounds = array<i64: 16, 32>}, {pipeline_mode = #tpu.pipeline_mode<synchronous>, transform_indices = @transform_1, window_bounds = array<i64: 1, 32>}, {pipeline_mode = #tpu.pipeline_mode<synchronous>, transform_indices = @transform_2, window_bounds = array<i64: 1, 32>}, {transform_indices = @transform_3, window_bounds = array<i64: 32, 128>}, {transform_indices = @transform_4, window_bounds = array<i64: 1, 128>}, {transform_indices = @transform_5, window_bounds = array<i64: 16, 128>}]} {
    %c0 = arith.constant 0 : index
    %c0_0 = arith.constant 0 : index
    %0 = vector.load %arg2[%c0, %c0_0] : memref<16x32xf32, #tpu.memory_space<vmem>>, vector<16x32xf32>
    %cst = arith.constant dense<0.000000e+00> : vector<16xf32>
    %1 = vector.multi_reduction <add>, %0, %cst [1] : vector<16x32xf32> to vector<16xf32>
    %2 = vector.shape_cast %1 : vector<16xf32> to vector<16x1xf32>
    %cst_1 = arith.constant 3.200000e+01 : f32
    %3 = vector.broadcast %cst_1 : f32 to vector<16x1xf32>
    %4 = arith.divf %2, %3 : vector<16x1xf32>
    %5 = vector.broadcast %4 : vector<16x1xf32> to vector<16x32xf32>
    %6 = arith.subf %0, %5 : vector<16x32xf32>
    %7 = arith.mulf %6, %6 : vector<16x32xf32>
    %cst_2 = arith.constant dense<0.000000e+00> : vector<16xf32>
    %8 = vector.multi_reduction <add>, %7, %cst_2 [1] : vector<16x32xf32> to vector<16xf32>
    %9 = vector.shape_cast %8 : vector<16xf32> to vector<16x1xf32>
    %cst_3 = arith.constant 3.200000e+01 : f32
    %10 = vector.broadcast %cst_3 : f32 to vector<16x1xf32>
    %11 = arith.divf %9, %10 : vector<16x1xf32>
    %12 = vector.broadcast %4 : vector<16x1xf32> to vector<16x32xf32>
    %13 = arith.subf %0, %12 : vector<16x32xf32>
    %cst_4 = arith.constant 9.99999997E-7 : f32
    %14 = vector.broadcast %cst_4 : f32 to vector<16x1xf32>
    %15 = arith.addf %11, %14 : vector<16x1xf32>
    %16 = math.rsqrt %15 : vector<16x1xf32>
    %17 = vector.broadcast %16 : vector<16x1xf32> to vector<16x32xf32>
    %18 = arith.mulf %13, %17 : vector<16x32xf32>
    %c0_5 = arith.constant 0 : index
    %c0_6 = arith.constant 0 : index
    %19 = vector.load %arg3[%c0_5, %c0_6] : memref<1x32xf32, #tpu.memory_space<vmem>>, vector<1x32xf32>
    %20 = vector.broadcast %19 : vector<1x32xf32> to vector<16x32xf32>
    %21 = arith.mulf %18, %20 : vector<16x32xf32>
    %c0_7 = arith.constant 0 : index
    %c0_8 = arith.constant 0 : index
    %22 = vector.load %arg4[%c0_7, %c0_8] : memref<1x32xf32, #tpu.memory_space<vmem>>, vector<1x32xf32>
    %23 = vector.broadcast %22 : vector<1x32xf32> to vector<16x32xf32>
    %24 = arith.addf %21, %23 : vector<16x32xf32>
    %25 = arith.truncf %24 : vector<16x32xf32> to vector<16x32xbf16>
    %c0_9 = arith.constant 0 : index
    %c0_10 = arith.constant 0 : index
    %26 = vector.load %arg5[%c0_9, %c0_10] : memref<32x128xbf16, #tpu.memory_space<vmem>>, vector<32x128xbf16>
    %cst_11 = arith.constant dense<0.000000e+00> : vector<16x128xf32>
    %27 = tpu.matmul %25, %26, %cst_11 {dimension_numbers = #tpu.dot_dimension_numbers<[1], [0], [0], [1], [0, 0, 1, 1], [], []>} : vector<16x32xbf16>, vector<32x128xbf16>, vector<16x128xf32> -> vector<16x128xf32>
    %c0_12 = arith.constant 0 : index
    %c0_13 = arith.constant 0 : index
    %28 = vector.load %arg6[%c0_12, %c0_13] : memref<1x128xf32, #tpu.memory_space<vmem>>, vector<1x128xf32>
    %29 = vector.broadcast %28 : vector<1x128xf32> to vector<16x128xf32>
    %30 = arith.addf %27, %29 : vector<16x128xf32>
    %cst_14 = arith.constant 5.000000e-01 : f32
    %31 = vector.broadcast %cst_14 : f32 to vector<16x128xf32>
    %32 = arith.mulf %31, %30 : vector<16x128xf32>
    %cst_15 = arith.constant 4.471500e-02 : f32
    %33 = vector.broadcast %cst_15 : f32 to vector<16x128xf32>
    %34 = arith.mulf %33, %30 : vector<16x128xf32>
    %35 = arith.mulf %34, %30 : vector<16x128xf32>
    %36 = arith.mulf %35, %30 : vector<16x128xf32>
    %37 = arith.addf %30, %36 : vector<16x128xf32>
    %cst_16 = arith.constant 0.797884583 : f32
    %38 = vector.broadcast %cst_16 : f32 to vector<16x128xf32>
    %39 = arith.mulf %38, %37 : vector<16x128xf32>
    %40 = math.tanh %39 : vector<16x128xf32>
    %cst_17 = arith.constant 1.000000e+00 : f32
    %41 = vector.broadcast %cst_17 : f32 to vector<16x128xf32>
    %42 = arith.addf %41, %40 : vector<16x128xf32>
    %43 = arith.mulf %32, %42 : vector<16x128xf32>
    %c0_18 = arith.constant 0 : index
    %c0_19 = arith.constant 0 : index
    %44 = vector.load %arg7[%c0_18, %c0_19] : memref<16x128xf32, #tpu.memory_space<vmem>>, vector<16x128xf32>
    tpu.vector_store %arg7[%c0_18, %c0_19], %43 {strides = array<i32>} : memref<16x128xf32, #tpu.memory_space<vmem>>, vector<16x128xf32>,
    return
  }
  func.func @transform_0(%arg0: i32, %arg1: i32) -> (i32, i32) {
    %c0_i32 = arith.constant 0 : i32
    %c0_i32_0 = arith.constant 0 : i32
    return %arg0, %c0_i32 : i32, i32
  }
  func.func @transform_1(%arg0: i32, %arg1: i32) -> (i32, i32) {
    %c0_i32 = arith.constant 0 : i32
    %c0_i32_0 = arith.constant 0 : i32
    %c0_i32_1 = arith.constant 0 : i32
    return %c0_i32, %c0_i32_0 : i32, i32
  }
  func.func @transform_2(%arg0: i32, %arg1: i32) -> (i32, i32) {
    %c0_i32 = arith.constant 0 : i32
    %c0_i32_0 = arith.constant 0 : i32
    %c0_i32_1 = arith.constant 0 : i32
    return %c0_i32, %c0_i32_0 : i32, i32
  }
  func.func @transform_3(%arg0: i32, %arg1: i32) -> (i32, i32) {
    %c0_i32 = arith.constant 0 : i32
    %c0_i32_0 = arith.constant 0 : i32
    return %c0_i32, %arg1 : i32, i32
  }
  func.func @transform_4(%arg0: i32, %arg1: i32) -> (i32, i32) {
    %c0_i32 = arith.constant 0 : i32
    %c0_i32_0 = arith.constant 0 : i32
    return %c0_i32, %arg1 : i32, i32
  }
  func.func @transform_5(%arg0: i32, %arg1: i32) -> (i32, i32) {
    %c0_i32 = arith.constant 0 : i32
    return %arg0, %arg1 : i32, i32
  }
}

</mosaic_0001>

<llo_original>
// kernel: context_bert_forward.11
$region0: #{context_bert_forward.11}
  #allocation0 [shape = 'u32[]', space=smem, size = 0x4, offset = 0x4, fixed_abs, tag = 'smem constant byte address 0x4 - core index']
  #allocation1 [shape = 'u32[144,128]{1,0:T(1,128)}', space=vmem, size = 0x12000, scoped, tag = 'internal scratch']
  %s0 = inlined_call_operand.vmem [shape: f32[2,32], index: 0, kind: input, shape index: {}]
  %s1 = inlined_call_operand.vmem [shape: bf16[32,64], index: 1, kind: input, shape index: {}]
  %s2 = inlined_call_operand.vmem [shape: f32[1,64], index: 2, kind: input, shape index: {}]
  %s3 = inlined_call_operand.vmem [shape: bf16[64,32], index: 3, kind: input, shape index: {}]
  %s4 = inlined_call_operand.vmem [shape: f32[1,32], index: 4, kind: input, shape index: {}]
  %s5 = inlined_call_operand.vmem [shape: f32[2,32], index: 5, kind: output, shape index: {}]
  %s6 = sld [smem:[#allocation0]]
  $region30: #{context_bert_forward.11} parent=0
    _
  %s8 = ssub.s32 1, %s6
  %s9 = scalar_select 0, %s8, %s6
  // Predicated region
  $region2: #{context_bert_forward.11} parent=0 // pred_check
    _
  $region3: #{context_bert_forward.11} parent=0 // pred_check_branch
    %11 = sbr.rel (0) target = $region5
  $region4: #{context_bert_forward.11} parent=0 // pred_region
    _
  $region5: #{context_bert_forward.11} parent=0 // pred_fallthru
    _
  // Predicated region
  $region6: #{context_bert_forward.11} parent=0 // pred_check
    _
  $region7: #{context_bert_forward.11} parent=0 // pred_check_branch
    %13 = sbr.rel (0) target = $region9
  $region8: #{context_bert_forward.11} parent=0 // pred_region
    _
  $region9: #{context_bert_forward.11} parent=0 // pred_fallthru
    _
  // Predicated region
  $region10: #{context_bert_forward.11} parent=0 // pred_check
    _
  $region11: #{context_bert_forward.11} parent=0 // pred_check_branch
    %15 = sbr.rel (0) target = $region13
  $region12: #{context_bert_forward.11} parent=0 // pred_region
    _
  $region13: #{context_bert_forward.11} parent=0 // pred_fallthru
    _
  // Predicated region
  $region14: #{context_bert_forward.11} parent=0 // pred_check
    _
  $region15: #{context_bert_forward.11} parent=0 // pred_check_branch
    %17 = sbr.rel (0) target = $region17
  $region16: #{context_bert_forward.11} parent=0 // pred_region
    _
  $region17: #{context_bert_forward.11} parent=0 // pred_fallthru
    _
  // Predicated region
  $region18: #{context_bert_forward.11} parent=0 // pred_check
    _
  $region19: #{context_bert_forward.11} parent=0 // pred_check_branch
    %19 = sbr.rel (0) target = $region21
  $region20: #{context_bert_forward.11} parent=0 // pred_region
    _
  $region21: #{context_bert_forward.11} parent=0 // pred_fallthru
    _
  %v21 = vld [vmem:[%s0] sm:$0x3]
  %v22 = vpack.c.bf16 %v21, %v21
  %v23 = vld [vmem:[%s1] sm:$0xf]
  %v24 = vld [vmem:[%s1 + $0x4] sm:$0xf]
  %v25 = vld [vmem:[%s1 + $0x8] sm:$0xf]
  %v26 = vld [vmem:[%s1 + $0xc] sm:$0xf]
  %v27 = vld [vmem:[%s2] sm:$0x1]
  %v29 = vlaneseq
  %v30 = vshrl.u32 %v29, 7
  %v31 = vsub.s32 0, %v30
  %v32 = vrot.slane %v27, %v31
  %v38 = vunpack.c.l.b16 %v23
  %v39 = vunpack.c.l.b16 %v24
  %v40 = vunpack.c.l.b16 %v25
  %v41 = vunpack.c.l.b16 %v26
  %v42 = vpack.c.b16 %v39, %v38
  %v43 = vpack.c.b16 %v41, %v40
  %vm46 = vcmask 261120
  %v48 = vsel %vm46, %v22, 0
  %50 = vmatprep.subr.bf16.mxu0 0
  %51 = vmatpush1.bf16.msra.mxu0 %v42
  %52 = vmatprep.subr.bf16.mxu0 0
  %53 = vmatpush1.bf16.msra.mxu0 %v43
  %54 = vmatprep.subr.bf16.mxu0 0
  %55 = vmatpush1.bf16.msra.mxu0 0
  %56 = vmatprep.subr.bf16.mxu0 0
  %57 = vmatpush1.bf16.msra.mxu0 0
  %58 = vmatprep.subr.bf16.mxu0 0
  %59 = vmatpush1.bf16.msra.mxu0 0
  %60 = vmatprep.subr.bf16.mxu0 0
  %61 = vmatpush1.bf16.msra.mxu0 0
  %62 = vmatprep.subr.bf16.mxu0 0
  %63 = vmatpush1.bf16.msra.mxu0 0
  %64 = vmatprep.subr.bf16.mxu0 0
  %65 = vmatpush1.bf16.msra.mxu0 0
  %66 = vmatprep.subr.bf16.mxu0 0
  %67 = vmatpush1.bf16.msra.mxu0 0
  %68 = vmatprep.subr.bf16.mxu0 0
  %69 = vmatpush1.bf16.msra.mxu0 0
  %70 = vmatprep.subr.bf16.mxu0 0
  %71 = vmatpush1.bf16.msra.mxu0 0
  %72 = vmatprep.subr.bf16.mxu0 0
  %73 = vmatpush1.bf16.msra.mxu0 0
  %74 = vmatprep.subr.bf16.mxu0 0
  %75 = vmatpush1.bf16.msra.mxu0 0
  %76 = vmatprep.subr.bf16.mxu0 0
  %77 = vmatpush1.bf16.msra.mxu0 0
  %78 = vmatprep.subr.bf16.mxu0 0
  %79 = vmatpush1.bf16.msra.mxu0 0
  %80 = vmatprep.subr.bf16.mxu0 0
  %81 = vmatpush1.bf16.msra.mxu0 0
  %82 = vmatprep.mubr.bf16.mxu0 0
  %83 = vmatmul.mubr.bf16.gmra.mrb[0].mxu0 %v48
  %v84 = vpop.f32.mrb[0].mxu0
  %v85 = vadd.f32 %v32, %v84
  %v86 = vpop.f32.mrb[0].mxu0
  %v87 = vpop.f32.mrb[0].mxu0
  %v88 = vpop.f32.mrb[0].mxu0
  %89 = vdwg.mxu0
  %v90 = vmul.f32 %v85, 0.5
  %v91 = vmul.f32 %v85, 0.044715
  %v92 = vmul.f32 %v91, %v85
  %v93 = vmul.f32 %v92, %v85
  %v94 = vadd.f32 %v85, %v93
  %v95 = vmul.f32 %v94, 0.7978846
  %v96 = vtanh.pop %v95
  %v97 = vadd.f32 %v96, 1.0
  %v98 = vmul.f32 %v90, %v97
  %v99 = vpack.c.bf16 %v98, %v98
  %v100 = vld [vmem:[%s3] sm:$0xf]
  %v101 = vld [vmem:[%s3 + $0x4] sm:$0xf]
  %v102 = vld [vmem:[%s3 + $0x8] sm:$0xf]
  %v103 = vld [vmem:[%s3 + $0xc] sm:$0xf]
  %v104 = vld [vmem:[%s3 + $0x10] sm:$0xf]
  %v105 = vld [vmem:[%s3 + $0x14] sm:$0xf]
  %v106 = vld [vmem:[%s3 + $0x18] sm:$0xf]
  %v107 = vld [vmem:[%s3 + $0x1c] sm:$0xf]
  %v108 = vld [vmem:[%s4] sm:$0x1]
  %v110 = vlaneseq
  %v111 = vshrl.u32 %v110, 7
  %v112 = vsub.s32 0, %v111
  %v113 = vrot.slane %v108, %v112
  %v123 = vunpack.c.l.b16 %v100
  %v124 = vunpack.c.l.b16 %v101
  %v125 = vunpack.c.l.b16 %v102
  %v126 = vunpack.c.l.b16 %v103
  %v127 = vunpack.c.l.b16 %v104
  %v128 = vunpack.c.l.b16 %v105
  %v129 = vunpack.c.l.b16 %v106
  %v130 = vunpack.c.l.b16 %v107
  %v131 = vpack.c.b16 %v124, %v123
  %v132 = vpack.c.b16 %v126, %v125
  %v133 = vpack.c.b16 %v128, %v127
  %v134 = vpack.c.b16 %v130, %v129
  %vm139 = vcmask 523264
  %v141 = vsel %vm139, %v99, 0
  %143 = vmatprep.subr.bf16.mxu0 0
  %144 = vmatpush1.bf16.msra.mxu0 %v131
  %145 = vmatprep.subr.bf16.mxu0 0
  %146 = vmatpush1.bf16.msra.mxu0 %v132
  %147 = vmatprep.subr.bf16.mxu0 0
  %148 = vmatpush1.bf16.msra.mxu0 %v133
  %149 = vmatprep.subr.bf16.mxu0 0
  %150 = vmatpush1.bf16.msra.mxu0 %v134
  %151 = vmatprep.subr.bf16.mxu0 0
  %152 = vmatpush1.bf16.msra.mxu0 0
  %153 = vmatprep.subr.bf16.mxu0 0
  %154 = vmatpush1.bf16.msra.mxu0 0
  %155 = vmatprep.subr.bf16.mxu0 0
  %156 = vmatpush1.bf16.msra.mxu0 0
  %157 = vmatprep.subr.bf16.mxu0 0
  %158 = vmatpush1.bf16.msra.mxu0 0
  %159 = vmatprep.subr.bf16.mxu0 0
  %160 = vmatpush1.bf16.msra.mxu0 0
  %161 = vmatprep.subr.bf16.mxu0 0
  %162 = vmatpush1.bf16.msra.mxu0 0
  %163 = vmatprep.subr.bf16.mxu0 0
  %164 = vmatpush1.bf16.msra.mxu0 0
  %165 = vmatprep.subr.bf16.mxu0 0
  %166 = vmatpush1.bf16.msra.mxu0 0
  %167 = vmatprep.subr.bf16.mxu0 0
  %168 = vmatpush1.bf16.msra.mxu0 0
  %169 = vmatprep.subr.bf16.mxu0 0
  %170 = vmatpush1.bf16.msra.mxu0 0
  %171 = vmatprep.subr.bf16.mxu0 0
  %172 = vmatpush1.bf16.msra.mxu0 0
  %173 = vmatprep.subr.bf16.mxu0 0
  %174 = vmatpush1.bf16.msra.mxu0 0
  %175 = vmatprep.mubr.bf16.mxu0 0
  %176 = vmatmul.mubr.bf16.gmra.mrb[0].mxu0 %v141
  %v177 = vpop.f32.mrb[0].mxu0
  %v178 = vadd.f32 %v113, %v177
  %v179 = vpop.f32.mrb[0].mxu0
  %v180 = vpop.f32.mrb[0].mxu0
  %v181 = vpop.f32.mrb[0].mxu0
  %182 = vdwg.mxu0
  %vm183 = vcmask 254976
  %184 = vst.msk [vmem:[%s5] sm:$0x3] %vm183, %v178
  // Predicated region
  $region22: #{context_bert_forward.11} parent=0 // pred_check
    _
  $region23: #{context_bert_forward.11} parent=0 // pred_check_branch
    %186 = sbr.rel (0) target = $region25
  $region24: #{context_bert_forward.11} parent=0 // pred_region
    _
  $region25: #{context_bert_forward.11} parent=0 // pred_fallthru
    _
  // Predicated region
  $region26: #{context_bert_forward.11} parent=0 // pred_check
    _
  $region27: #{context_bert_forward.11} parent=0 // pred_check_branch
    %188 = sbr.rel (0) target = $region29
  $region28: #{context_bert_forward.11} parent=0 // pred_region
    _
  $region29: #{context_bert_forward.11} parent=0 // pred_fallthru
    _

// kernel: context_bert_forward.14
$region0: #{context_bert_forward.14}
  #allocation0 [shape = 'u32[]', space=smem, size = 0x4, offset = 0x4, fixed_abs, tag = 'smem constant byte address 0x4 - core index']
  #allocation1 [shape = 'u32[144,128]{1,0:T(1,128)}', space=vmem, size = 0x12000, scoped, tag = 'internal scratch']
  %s0 = inlined_call_operand.vmem [shape: f32[16,32], index: 0, kind: input, shape index: {}]
  %s1 = inlined_call_operand.vmem [shape: bf16[32,32], index: 1, kind: input, shape index: {}]
  %s2 = inlined_call_operand.vmem [shape: f32[1,32], index: 2, kind: input, shape index: {}]
  %s3 = inlined_call_operand.vmem [shape: f32[16,32], index: 3, kind: input, shape index: {}, may-alias: {3,5}]
  %s4 = inlined_call_operand.vmem [shape: f32[16,32], index: 4, kind: input, shape index: {}]
  %s5 = inlined_call_operand.vmem [shape: f32[16,32], index: 5, kind: output, shape index: {}, may-alias: {3,5}]
  %s6 = sld [smem:[#allocation0]]
  $region30: #{context_bert_forward.14} parent=0
    _
  %s8 = ssub.s32 1, %s6
  %s9 = scalar_select 0, %s8, %s6
  // Predicated region
  $region2: #{context_bert_forward.14} parent=0 // pred_check
    _
  $region3: #{context_bert_forward.14} parent=0 // pred_check_branch
    %11 = sbr.rel (0) target = $region5
  $region4: #{context_bert_forward.14} parent=0 // pred_region
    _
  $region5: #{context_bert_forward.14} parent=0 // pred_fallthru
    _
  // Predicated region
  $region6: #{context_bert_forward.14} parent=0 // pred_check
    _
  $region7: #{context_bert_forward.14} parent=0 // pred_check_branch
    %13 = sbr.rel (0) target = $region9
  $region8: #{context_bert_forward.14} parent=0 // pred_region
    _
  $region9: #{context_bert_forward.14} parent=0 // pred_fallthru
    _
  // Predicated region
  $region10: #{context_bert_forward.14} parent=0 // pred_check
    _
  $region11: #{context_bert_forward.14} parent=0 // pred_check_branch
    %15 = sbr.rel (0) target = $region13
  $region12: #{context_bert_forward.14} parent=0 // pred_region
    _
  $region13: #{context_bert_forward.14} parent=0 // pred_fallthru
    _
  // Predicated region
  $region14: #{context_bert_forward.14} parent=0 // pred_check
    _
  $region15: #{context_bert_forward.14} parent=0 // pred_check_branch
    %17 = sbr.rel (0) target = $region17
  $region16: #{context_bert_forward.14} parent=0 // pred_region
    _
  $region17: #{context_bert_forward.14} parent=0 // pred_fallthru
    _
  // Predicated region
  $region18: #{context_bert_forward.14} parent=0 // pred_check
    _
  $region19: #{context_bert_forward.14} parent=0 // pred_check_branch
    %19 = sbr.rel (0) target = $region21
  $region20: #{context_bert_forward.14} parent=0 // pred_region
    _
  $region21: #{context_bert_forward.14} parent=0 // pred_fallthru
    _
  %v21 = vld [vmem:[%s0] sm:$0xff]
  %v22 = vld [vmem:[%s0 + $0x8] sm:$0xff]
  %v23 = vpack.c.bf16 %v22, %v21
  %v24 = vld [vmem:[%s1] sm:$0xf]
  %v25 = vld [vmem:[%s1 + $0x4] sm:$0xf]
  %v26 = vld [vmem:[%s1 + $0x8] sm:$0xf]
  %v27 = vld [vmem:[%s1 + $0xc] sm:$0xf]
  %v28 = vld [vmem:[%s2] sm:$0x1]
  %v30 = vlaneseq
  %v31 = vshrl.u32 %v30, 7
  %v32 = vsub.s32 0, %v31
  %v33 = vrot.slane %v28, %v32
  %v39 = vunpack.c.l.b16 %v24
  %v40 = vunpack.c.l.b16 %v25
  %v41 = vunpack.c.l.b16 %v26
  %v42 = vunpack.c.l.b16 %v27
  %v43 = vpack.c.b16 %v40, %v39
  %v44 = vpack.c.b16 %v42, %v41
  %vm47 = vcmask 261120
  %v49 = vsel %vm47, %v23, 0
  %51 = vmatprep.subr.bf16.mxu0 0
  %52 = vmatpush1.bf16.msra.mxu0 %v43
  %53 = vmatprep.subr.bf16.mxu0 0
  %54 = vmatpush1.bf16.msra.mxu0 %v44
  %55 = vmatprep.subr.bf16.mxu0 0
  %56 = vmatpush1.bf16.msra.mxu0 0
  %57 = vmatprep.subr.bf16.mxu0 0
  %58 = vmatpush1.bf16.msra.mxu0 0
  %59 = vmatprep.subr.bf16.mxu0 0
  %60 = vmatpush1.bf16.msra.mxu0 0
  %61 = vmatprep.subr.bf16.mxu0 0
  %62 = vmatpush1.bf16.msra.mxu0 0
  %63 = vmatprep.subr.bf16.mxu0 0
  %64 = vmatpush1.bf16.msra.mxu0 0
  %65 = vmatprep.subr.bf16.mxu0 0
  %66 = vmatpush1.bf16.msra.mxu0 0
  %67 = vmatprep.subr.bf16.mxu0 0
  %68 = vmatpush1.bf16.msra.mxu0 0
  %69 = vmatprep.subr.bf16.mxu0 0
  %70 = vmatpush1.bf16.msra.mxu0 0
  %71 = vmatprep.subr.bf16.mxu0 0
  %72 = vmatpush1.bf16.msra.mxu0 0
  %73 = vmatprep.subr.bf16.mxu0 0
  %74 = vmatpush1.bf16.msra.mxu0 0
  %75 = vmatprep.subr.bf16.mxu0 0
  %76 = vmatpush1.bf16.msra.mxu0 0
  %77 = vmatprep.subr.bf16.mxu0 0
  %78 = vmatpush1.bf16.msra.mxu0 0
  %79 = vmatprep.subr.bf16.mxu0 0
  %80 = vmatpush1.bf16.msra.mxu0 0
  %81 = vmatprep.subr.bf16.mxu0 0
  %82 = vmatpush1.bf16.msra.mxu0 0
  %83 = vmatprep.mubr.bf16.mxu0 0
  %84 = vmatmul.mubr.bf16.gmra.mrb[0].mxu0 %v49
  %v85 = vpop.f32.mrb[0].mxu0
  %v86 = vadd.f32 %v33, %v85
  %v87 = vpop.f32.mrb[0].mxu0
  %v88 = vpop.f32.mrb[0].mxu0
  %v89 = vadd.f32 %v33, %v88
  %v90 = vpop.f32.mrb[0].mxu0
  %91 = vdwg.mxu0
  %v92 = vld [vmem:[%s3] sm:$0xff]
  %v93 = vld [vmem:[%s3 + $0x8] sm:$0xff]
  %v94 = vadd.f32 %v86, %v92
  %v95 = vadd.f32 %v89, %v93
  %v96 = vld [vmem:[%s4] sm:$0xff]
  %v97 = vld [vmem:[%s4 + $0x8] sm:$0xff]
  %v98 = vadd.f32 %v94, %v96
  %v99 = vadd.f32 %v95, %v97
  %100 = vst.msk [vmem:[%s5] sm:$0xff] %vm47, %v98
  %101 = vst.msk [vmem:[%s5 + $0x8] sm:$0xff] %vm47, %v99
  // Predicated region
  $region22: #{context_bert_forward.14} parent=0 // pred_check
    _
  $region23: #{context_bert_forward.14} parent=0 // pred_check_branch
    %103 = sbr.rel (0) target = $region25
  $region24: #{context_bert_forward.14} parent=0 // pred_region
    _
  $region25: #{context_bert_forward.14} parent=0 // pred_fallthru
    _
  // Predicated region
  $region26: #{context_bert_forward.14} parent=0 // pred_check
    _
  $region27: #{context_bert_forward.14} parent=0 // pred_check_branch
    %105 = sbr.rel (0) target = $region29
  $region28: #{context_bert_forward.14} parent=0 // pred_region
    _
  $region29: #{context_bert_forward.14} parent=0 // pred_fallthru
    _

// kernel: context_bert_forward.12
$region0: #{context_bert_forward.12}
  #allocation0 [shape = 'u32[]', space=smem, size = 0x4, offset = 0x4, fixed_abs, tag = 'smem constant byte address 0x4 - core index']
  #allocation1 [shape = 'u32[144,128]{1,0:T(1,128)}', space=vmem, size = 0x12000, scoped, tag = 'internal scratch']
  %s0 = inlined_call_operand.vmem [shape: f32[16,32], index: 0, kind: input, shape index: {}]
  %s1 = inlined_call_operand.vmem [shape: f32[16,32], index: 1, kind: input, shape index: {}]
  %s2 = inlined_call_operand.vmem [shape: f32[1,32], index: 2, kind: input, shape index: {}]
  %s3 = inlined_call_operand.vmem [shape: f32[1,32], index: 3, kind: input, shape index: {}]
  %s4 = inlined_call_operand.vmem [shape: bf16[32,96], index: 4, kind: input, shape index: {}]
  %s5 = inlined_call_operand.vmem [shape: f32[1,96], index: 5, kind: input, shape index: {}]
  %s6 = inlined_call_operand.vmem [shape: f32[16,96], index: 6, kind: output, shape index: {}]
  %s7 = sld [smem:[#allocation0]]
  $region34: #{context_bert_forward.12} parent=0
    _
  %s9 = ssub.s32 1, %s7
  %s10 = scalar_select 0, %s9, %s7
  // Predicated region
  $region2: #{context_bert_forward.12} parent=0 // pred_check
    _
  $region3: #{context_bert_forward.12} parent=0 // pred_check_branch
    %12 = sbr.rel (0) target = $region5
  $region4: #{context_bert_forward.12} parent=0 // pred_region
    _
  $region5: #{context_bert_forward.12} parent=0 // pred_fallthru
    _
  // Predicated region
  $region6: #{context_bert_forward.12} parent=0 // pred_check
    _
  $region7: #{context_bert_forward.12} parent=0 // pred_check_branch
    %14 = sbr.rel (0) target = $region9
  $region8: #{context_bert_forward.12} parent=0 // pred_region
    _
  $region9: #{context_bert_forward.12} parent=0 // pred_fallthru
    _
  // Predicated region
  $region10: #{context_bert_forward.12} parent=0 // pred_check
    _
  $region11: #{context_bert_forward.12} parent=0 // pred_check_branch
    %16 = sbr.rel (0) target = $region13
  $region12: #{context_bert_forward.12} parent=0 // pred_region
    _
  $region13: #{context_bert_forward.12} parent=0 // pred_fallthru
    _
  // Predicated region
  $region14: #{context_bert_forward.12} parent=0 // pred_check
    _
  $region15: #{context_bert_forward.12} parent=0 // pred_check_branch
    %18 = sbr.rel (0) target = $region17
  $region16: #{context_bert_forward.12} parent=0 // pred_region
    _
  $region17: #{context_bert_forward.12} parent=0 // pred_fallthru
    _
  // Predicated region
  $region18: #{context_bert_forward.12} parent=0 // pred_check
    _
  $region19: #{context_bert_forward.12} parent=0 // pred_check_branch
    %20 = sbr.rel (0) target = $region21
  $region20: #{context_bert_forward.12} parent=0 // pred_region
    _
  $region21: #{context_bert_forward.12} parent=0 // pred_fallthru
    _
  // Predicated region
  $region22: #{context_bert_forward.12} parent=0 // pred_check
    _
  $region23: #{context_bert_forward.12} parent=0 // pred_check_branch
    %22 = sbr.rel (0) target = $region25
  $region24: #{context_bert_forward.12} parent=0 // pred_region
    _
  $region25: #{context_bert_forward.12} parent=0 // pred_fallthru
    _
  %v24 = vld [vmem:[%s0] sm:$0xff]
  %v25 = vld [vmem:[%s0 + $0x8] sm:$0xff]
  %v26 = vld [vmem:[%s1] sm:$0xff]
  %v27 = vld [vmem:[%s1 + $0x8] sm:$0xff]
  %v28 = vadd.f32 %v24, %v26
  %v29 = vadd.f32 %v25, %v27
  %vm30 = vcmask 261120
  %v31 = vsel %vm30, %v28, 0.0
  %32 = vadd.xlane.f32.xlu0 %v31
  %v33 = vpop.xlane.xlu0 %32
  %v34 = vsel %vm30, %v29, 0.0
  %35 = vadd.xlane.f32.xlu0 %v34
  %v36 = vpop.xlane.xlu0 %35
  %v37 = vrcp.pop 32.0
  %v38 = vmul.f32 %v33, %v37
  %v39 = vmul.f32 %v36, %v37
  %v40 = vsub.f32 %v28, %v38
  %v41 = vsub.f32 %v29, %v39
  %v42 = vmul.f32 %v40, %v40
  %v43 = vmul.f32 %v41, %v41
  %v44 = vsel %vm30, %v42, 0.0
  %45 = vadd.xlane.f32.xlu0 %v44
  %v46 = vpop.xlane.xlu0 %45
  %v47 = vsel %vm30, %v43, 0.0
  %48 = vadd.xlane.f32.xlu0 %v47
  %v49 = vpop.xlane.xlu0 %48
  %v50 = vmul.f32 %v46, %v37
  %v51 = vmul.f32 %v49, %v37
  %v52 = vadd.f32 %v50, 1e-06
  %v53 = vadd.f32 %v51, 1e-06
  %v54 = vrsqrt.pop %v52
  %v55 = vrsqrt.pop %v53
  %v56 = vmul.f32 %v40, %v54
  %v57 = vmul.f32 %v41, %v55
  %v58 = vld [vmem:[%s2] sm:$0x1]
  %v60 = vlaneseq
  %v61 = vshrl.u32 %v60, 7
  %v62 = vsub.s32 0, %v61
  %v63 = vrot.slane %v58, %v62
  %v65 = vmul.f32 %v56, %v63
  %v66 = vmul.f32 %v57, %v63
  %v67 = vld [vmem:[%s3] sm:$0x1]
  %v69 = vlaneseq
  %v70 = vshrl.u32 %v69, 7
  %v71 = vsub.s32 0, %v70
  %v72 = vrot.slane %v67, %v71
  %v74 = vadd.f32 %v65, %v72
  %v75 = vadd.f32 %v66, %v72
  %v76 = vpack.c.bf16 %v75, %v74
  %v77 = vld [vmem:[%s4] sm:$0xf]
  %v78 = vld [vmem:[%s4 + $0x4] sm:$0xf]
  %v79 = vld [vmem:[%s4 + $0x8] sm:$0xf]
  %v80 = vld [vmem:[%s4 + $0xc] sm:$0xf]
  %v81 = vld [vmem:[%s5] sm:$0x1]
  %v83 = vlaneseq
  %v84 = vshrl.u32 %v83, 7
  %v85 = vsub.s32 0, %v84
  %v86 = vrot.slane %v81, %v85
  %v92 = vunpack.c.l.b16 %v77
  %v93 = vunpack.c.l.b16 %v78
  %v94 = vunpack.c.l.b16 %v79
  %v95 = vunpack.c.l.b16 %v80
  %v96 = vpack.c.b16 %v93, %v92
  %v97 = vpack.c.b16 %v95, %v94
  %v101 = vsel %vm30, %v76, 0
  %103 = vmatprep.subr.bf16.mxu0 0
  %104 = vmatpush1.bf16.msra.mxu0 %v96
  %105 = vmatprep.subr.bf16.mxu0 0
  %106 = vmatpush1.bf16.msra.mxu0 %v97
  %107 = vmatprep.subr.bf16.mxu0 0
  %108 = vmatpush1.bf16.msra.mxu0 0
  %109 = vmatprep.subr.bf16.mxu0 0
  %110 = vmatpush1.bf16.msra.mxu0 0
  %111 = vmatprep.subr.bf16.mxu0 0
  %112 = vmatpush1.bf16.msra.mxu0 0
  %113 = vmatprep.subr.bf16.mxu0 0
  %114 = vmatpush1.bf16.msra.mxu0 0
  %115 = vmatprep.subr.bf16.mxu0 0
  %116 = vmatpush1.bf16.msra.mxu0 0
  %117 = vmatprep.subr.bf16.mxu0 0
  %118 = vmatpush1.bf16.msra.mxu0 0
  %119 = vmatprep.subr.bf16.mxu0 0
  %120 = vmatpush1.bf16.msra.mxu0 0
  %121 = vmatprep.subr.bf16.mxu0 0
  %122 = vmatpush1.bf16.msra.mxu0 0
  %123 = vmatprep.subr.bf16.mxu0 0
  %124 = vmatpush1.bf16.msra.mxu0 0
  %125 = vmatprep.subr.bf16.mxu0 0
  %126 = vmatpush1.bf16.msra.mxu0 0
  %127 = vmatprep.subr.bf16.mxu0 0
  %128 = vmatpush1.bf16.msra.mxu0 0
  %129 = vmatprep.subr.bf16.mxu0 0
  %130 = vmatpush1.bf16.msra.mxu0 0
  %131 = vmatprep.subr.bf16.mxu0 0
  %132 = vmatpush1.bf16.msra.mxu0 0
  %133 = vmatprep.subr.bf16.mxu0 0
  %134 = vmatpush1.bf16.msra.mxu0 0
  %135 = vmatprep.mubr.bf16.mxu0 0
  %136 = vmatmul.mubr.bf16.gmra.mrb[0].mxu0 %v101
  %v137 = vpop.f32.mrb[0].mxu0
  %v138 = vadd.f32 %v86, %v137
  %v139 = vpop.f32.mrb[0].mxu0
  %v140 = vpop.f32.mrb[0].mxu0
  %v141 = vadd.f32 %v86, %v140
  %v142 = vpop.f32.mrb[0].mxu0
  %143 = vdwg.mxu0
  %vm144 = vcmask 785408
  %145 = vst.msk [vmem:[%s6] sm:$0xff] %vm144, %v138
  %146 = vst.msk [vmem:[%s6 + $0x8] sm:$0xff] %vm144, %v141
  // Predicated region
  $region26: #{context_bert_forward.12} parent=0 // pred_check
    _
  $region27: #{context_bert_forward.12} parent=0 // pred_check_branch
    %148 = sbr.rel (0) target = $region29
  $region28: #{context_bert_forward.12} parent=0 // pred_region
    _
  $region29: #{context_bert_forward.12} parent=0 // pred_fallthru
    _
  // Predicated region
  $region30: #{context_bert_forward.12} parent=0 // pred_check
    _
  $region31: #{context_bert_forward.12} parent=0 // pred_check_branch
    %150 = sbr.rel (0) target = $region33
  $region32: #{context_bert_forward.12} parent=0 // pred_region
    _
  $region33: #{context_bert_forward.12} parent=0 // pred_fallthru
    _

// kernel: context_bert_forward.13
$region0: #{context_bert_forward.13}
  #allocation0 [shape = 'u32[]', space=smem, size = 0x4, offset = 0x4, fixed_abs, tag = 'smem constant byte address 0x4 - core index']
  #allocation1 [shape = 'u32[144,128]{1,0:T(1,128)}', space=vmem, size = 0x12000, scoped, tag = 'internal scratch']
  %s0 = inlined_call_operand.vmem [shape: f32[2,8,96], index: 0, kind: input, shape index: {}]
  %s1 = inlined_call_operand.vmem [shape: f32[2,1,8], index: 1, kind: input, shape index: {}]
  %s2 = inlined_call_operand.vmem [shape: f32[2,8,32], index: 2, kind: output, shape index: {}]
  %s3 = sld [smem:[#allocation0]]
  $region41: #{context_bert_forward.13} parent=0
    _
  %s5 = ssub.s32 1, %s3
  %s6 = scalar_select 0, %s5, %s3
  loop: start=0, step=1, limit=4
  $region2: #{context_bert_forward.13} parent=0 // loop_pre_header
    _
  $region3: #{context_bert_forward.13} parent=0 // loop_header
    %s8 = sphi 0, %s12
    %p9 = scmp.ge.s32.totalorder %s8, 4
    %s18 = sphi 0, %s20
    %s21 = sphi 0, %s18
    %s22 = sphi 0, %s21
    %s38 = sphi 0, %s22
    %s44 = sphi 0, %s46
    %s47 = sphi 0, %s44
    %s48 = sphi 0, %s47
    %s64 = sphi 0, %s48
    %s70 = sphi 0, %s72
    %s73 = sphi 0, %s70
    %s74 = sphi 0, %s73
    %s90 = sphi 0, %s74
  $region4: #{context_bert_forward.13} parent=0 // loop_header_branch
    %11 = sbr.rel (%p9) target = $region8
  $region5: #{context_bert_forward.13} parent=0 // loop_body
    %s13 = ssub.s32 %s8, 1
    %s14 = ssub.s32 %s8, 2
    %s15 = sadd.s32 %s8, 1
    %s16 = ssub.s32 %s8, %s15
    %p17 = scmp.eq.s32.totalorder %s16, 0
    %s19 = sadd.s32 %s18, 1
    %s20 = scalar_select %p17, %s18, %s19
    %p23 = pneg %p17
    %p24 = scmp.eq.s32.totalorder %s8, 1
    %p25 = por %p23, %p24
    %p26 = scmp.ne.s32.totalorder %s18, %s21
    %p27 = scmp.eq.s32.totalorder %s8, 0
    %p28 = por %p26, %p27
    %p29 = scmp.ne.s32.totalorder %s18, %s21
    %p30 = scmp.eq.s32.totalorder %s13, 1
    %p31 = por %p29, %p30
    %p32 = scmp.ne.s32.totalorder %s21, %s22
    %p33 = scmp.eq.s32.totalorder %s13, 0
    %p34 = por %p32, %p33
    %p35 = scmp.ne.s32.totalorder %s21, %s22
    %p36 = scmp.eq.s32.totalorder %s14, 1
    %p37 = por %p35, %p36
    %p39 = scmp.ne.s32.totalorder %s22, %s38
    %p40 = scmp.eq.s32.totalorder %s14, 0
    %p41 = por %p39, %p40
    %s42 = ssub.s32 %s8, %s15
    %p43 = scmp.eq.s32.totalorder %s42, 0
    %s45 = sadd.s32 %s44, 1
    %s46 = scalar_select %p43, %s44, %s45
    %p49 = pneg %p43
    %p50 = scmp.eq.s32.totalorder %s8, 1
    %p51 = por %p49, %p50
    %p52 = scmp.ne.s32.totalorder %s44, %s47
    %p53 = scmp.eq.s32.totalorder %s8, 0
    %p54 = por %p52, %p53
    %p55 = scmp.ne.s32.totalorder %s44, %s47
    %p56 = scmp.eq.s32.totalorder %s13, 1
    %p57 = por %p55, %p56
    %p58 = scmp.ne.s32.totalorder %s47, %s48
    %p59 = scmp.eq.s32.totalorder %s13, 0
    %p60 = por %p58, %p59
    %p61 = scmp.ne.s32.totalorder %s47, %s48
    %p62 = scmp.eq.s32.totalorder %s14, 1
    %p63 = por %p61, %p62
    %p65 = scmp.ne.s32.totalorder %s48, %s64
    %p66 = scmp.eq.s32.totalorder %s14, 0
    %p67 = por %p65, %p66
    %s68 = ssub.s32 %s8, %s15
    %p69 = scmp.eq.s32.totalorder %s68, 0
    %s71 = sadd.s32 %s70, 1
    %s72 = scalar_select %p69, %s70, %s71
    %p75 = pneg %p69
    %p76 = scmp.eq.s32.totalorder %s8, 1
    %p77 = por %p75, %p76
    %p78 = scmp.ne.s32.totalorder %s70, %s73
    %p79 = scmp.eq.s32.totalorder %s8, 0
    %p80 = por %p78, %p79
    %p81 = scmp.ne.s32.totalorder %s70, %s73
    %p82 = scmp.eq.s32.totalorder %s13, 1
    %p83 = por %p81, %p82
    %p84 = scmp.ne.s32.totalorder %s73, %s74
    %p85 = scmp.eq.s32.totalorder %s13, 0
    %p86 = por %p84, %p85
    %p87 = scmp.ne.s32.totalorder %s73, %s74
    %p88 = scmp.eq.s32.totalorder %s14, 1
    %p89 = por %p87, %p88
    %p91 = scmp.ne.s32.totalorder %s74, %s90
    %p92 = scmp.eq.s32.totalorder %s14, 0
    %p93 = por %p91, %p92
    %p94 = scmp.le.s32.totalorder 1, %s8
    %p95 = scmp.lt.s32.totalorder %s8, 3
    %p96 = pnand %p94, %p95
    %p97 = pneg %p96
    // Predicated region
    $region9: #{context_bert_forward.13} parent=5 // pred_check
      _
    $region10: #{context_bert_forward.13} parent=5 // pred_check_branch
      %99 = sbr.rel (%p96) target = $region12
    $region11: #{context_bert_forward.13} parent=5 // pred_region
      %s100 = ssub.s32 %s8, 1
    $region12: #{context_bert_forward.13} parent=5 // pred_fallthru
      _
    %p101 = scmp.lt.s32.totalorder %s8, 2
    // Predicated region
    $region13: #{context_bert_forward.13} parent=5 // pred_check
      %p102 = pneg %p101
    $region14: #{context_bert_forward.13} parent=5 // pred_check_branch
      %104 = sbr.rel (%p102) target = $region16
    $region15: #{context_bert_forward.13} parent=5 // pred_region
      // Predicated region
      $region17: #{context_bert_forward.13} parent=15 // pred_check
        %p105 = pneg %p28
      $region18: #{context_bert_forward.13} parent=15 // pred_check_branch
        %107 = sbr.rel (%p105) target = $region20
      $region19: #{context_bert_forward.13} parent=15 // pred_region
        %p108 = scmp.lt.s32.totalorder %s8, 1
        %s109 = scalar_select %p108, %s8, 1
        %s110 = smul.addr %s109, 8
        %s111 = scalar_lea.vmem %s0, %s110
      $region20: #{context_bert_forward.13} parent=15 // pred_fallthru
        _
      // Predicated region
      $region21: #{context_bert_forward.13} parent=15 // pred_check
        %p112 = pneg %p54
      $region22: #{context_bert_forward.13} parent=15 // pred_check_branch
        %114 = sbr.rel (%p112) target = $region24
      $region23: #{context_bert_forward.13} parent=15 // pred_region
        %p115 = scmp.lt.s32.totalorder %s8, 1
        %s116 = scalar_select %p115, %s8, 1
        %s117 = scalar_lea.vmem %s1, %s116
      $region24: #{context_bert_forward.13} parent=15 // pred_fallthru
        _
    $region16: #{context_bert_forward.13} parent=5 // pred_fallthru
      _
    %p118 = scmp.le.s32.totalorder 1, %s8
    %p119 = scmp.lt.s32.totalorder %s8, 3
    %p120 = pnand %p118, %p119
    %p121 = pneg %p120
    // Predicated region
    $region25: #{context_bert_forward.13} parent=5 // pred_check
      _
    $region26: #{context_bert_forward.13} parent=5 // pred_check_branch
      %123 = sbr.rel (%p120) target = $region28
    $region27: #{context_bert_forward.13} parent=5 // pred_region
      %s124 = ssub.s32 %s8, 1
      %p125 = scmp.lt.s32.totalorder %s13, 1
      %s126 = scalar_select %p125, %s13, 1
      %s127 = smul.addr %s126, 8
      %s128 = scalar_lea.vmem %s0, %s127
      %p129 = pneg %p34
      %p130 = pneg %p31
      %p131 = scmp.lt.s32.totalorder %s13, 1
      %s132 = scalar_select %p131, %s13, 1
      %s133 = scalar_lea.vmem %s1, %s132
      %p134 = pneg %p60
      %p135 = pneg %p57
      %p136 = pneg %p86
      %p137 = pneg %p83
      %p138 = scmp.lt.s32.totalorder %s13, 1
      %s139 = scalar_select %p138, %s13, 1
      %s140 = smul.addr %s139, 8
      %s141 = scalar_lea.vmem %s2, %s140
      %p142 = scmp.lt.s32.totalorder %s13, 1
      %s143 = scalar_select %p142, %s13, 1
      %s144 = smul.addr %s143, 8
      %s145 = scalar_lea.vmem %s0, %s144
      %p146 = scmp.lt.s32.totalorder %s13, 1
      %s147 = scalar_select %p146, %s13, 1
      %s148 = scalar_lea.vmem %s1, %s147
      %p149 = scmp.lt.s32.totalorder %s13, 1
      %s150 = scalar_select %p149, %s13, 1
      %s151 = smul.addr %s150, 8
      %s152 = scalar_lea.vmem %s2, %s151
      %v154 = vld [vmem:[%s145] sm:$0xff]
      %v155 = vld [vmem:[%s148] sm:$0x1]
      %vm156 = vcmp.gt.f32.partialorder %v155, 0.0
      %v157 = vpack.c.bf16 %v154, %v154
      %159 = vrot.lane.b32.xlu0 %v157, 96
      %v160 = vpop.permute.xlu0 %159
      %vm161 = vcmask 64512
      %v163 = vsel %vm161, %v157, 0
      %v166 = vsel %vm161, %v160, 0
      %168 = vmatprep.subr.bf16.mxu0 0
      %169 = vmatpush1.bf16.xpose.msra.mxu0 %v166
      %170 = vmatprep.subr.bf16.mxu0 0
      %171 = vmatpush1.bf16.xpose.msra.mxu0 0
      %172 = vmatprep.subr.bf16.mxu0 0
      %173 = vmatpush1.bf16.xpose.msra.mxu0 0
      %174 = vmatprep.subr.bf16.mxu0 0
      %175 = vmatpush1.bf16.xpose.msra.mxu0 0
      %176 = vmatprep.subr.bf16.mxu0 0
      %177 = vmatpush1.bf16.xpose.msra.mxu0 0
      %178 = vmatprep.subr.bf16.mxu0 0
      %179 = vmatpush1.bf16.xpose.msra.mxu0 0
      %180 = vmatprep.subr.bf16.mxu0 0
      %181 = vmatpush1.bf16.xpose.msra.mxu0 0
      %182 = vmatprep.subr.bf16.mxu0 0
      %183 = vmatpush1.bf16.xpose.msra.mxu0 0
      %184 = vmatprep.subr.bf16.mxu0 0
      %185 = vmatpush1.bf16.xpose.msra.mxu0 0
      %186 = vmatprep.subr.bf16.mxu0 0
      %187 = vmatpush1.bf16.xpose.msra.mxu0 0
      %188 = vmatprep.subr.bf16.mxu0 0
      %189 = vmatpush1.bf16.xpose.msra.mxu0 0
      %190 = vmatprep.subr.bf16.mxu0 0
      %191 = vmatpush1.bf16.xpose.msra.mxu0 0
      %192 = vmatprep.subr.bf16.mxu0 0
      %193 = vmatpush1.bf16.xpose.msra.mxu0 0
      %194 = vmatprep.subr.bf16.mxu0 0
      %195 = vmatpush1.bf16.xpose.msra.mxu0 0
      %196 = vmatprep.subr.bf16.mxu0 0
      %197 = vmatpush1.bf16.xpose.msra.mxu0 0
      %198 = vmatprep.subr.bf16.mxu0 0
      %199 = vmatpush1.bf16.xpose.msra.mxu0 0
      %200 = vmatprep.mubr.bf16.mxu0 0
      %201 = vmatmul.mubr.bf16.gmra.mrb[0].mxu0 %v163
      %v202 = vpop.f32.mrb[0].mxu0
      %v203 = vadd.f32 0.0, %v202
      %v204 = vpop.f32.mrb[0].mxu0
      %v205 = vpop.f32.mrb[0].mxu0
      %v206 = vpop.f32.mrb[0].mxu0
      %207 = vdwg.mxu0
      %v208 = vmul.f32 %v203, 0.35355338
      %v209 = vsel %vm156, 1, 0
      %v210 = vlaneseq
      %v211 = vshrl.u32 %v210, 7
      %v212 = vsub.s32 0, %v211
      %v213 = vrot.slane %v209, %v212
      %vm214 = vcmp.eq.s32.totalorder %v213, 1
      %v215 = vsel %vm214, %v208, -1e+09
      %v216 = vsel %vm161, %v215, -inf
      %217 = vmax.xlane.f32.xlu0 %v216
      %v218 = vpop.xlane.xlu0 %217
      %v219 = vsub.f32 %v215, %v218
      %v220 = vmul.f32 %v219, 1.442695
      %v221 = vpow.pop %v220
      %v222 = vsel %vm161, %v221, 0.0
      %223 = vadd.xlane.f32.xlu0 %v222
      %v224 = vpop.xlane.xlu0 %223
      %v225 = vrcp.pop %v224
      %v226 = vmul.f32 %v221, %v225
      %v227 = vpack.c.bf16 %v226, %v226
      %228 = vrot.lane.b32.xlu0 %v157, 64
      %v229 = vpop.permute.xlu0 %228
      %v231 = vsel %vm161, %v227, 0
      %vm233 = vcmask 1043456
      %v235 = vsel %vm233, %v229, 0
      %237 = vmatprep.subr.bf16.mxu0 0
      %238 = vmatpush1.bf16.msra.mxu0 %v235
      %239 = vmatprep.subr.bf16.mxu0 0
      %240 = vmatpush1.bf16.msra.mxu0 0
      %241 = vmatprep.subr.bf16.mxu0 0
      %242 = vmatpush1.bf16.msra.mxu0 0
      %243 = vmatprep.subr.bf16.mxu0 0
      %244 = vmatpush1.bf16.msra.mxu0 0
      %245 = vmatprep.subr.bf16.mxu0 0
      %246 = vmatpush1.bf16.msra.mxu0 0
      %247 = vmatprep.subr.bf16.mxu0 0
      %248 = vmatpush1.bf16.msra.mxu0 0
      %249 = vmatprep.subr.bf16.mxu0 0
      %250 = vmatpush1.bf16.msra.mxu0 0
      %251 = vmatprep.subr.bf16.mxu0 0
      %252 = vmatpush1.bf16.msra.mxu0 0
      %253 = vmatprep.subr.bf16.mxu0 0
      %254 = vmatpush1.bf16.msra.mxu0 0
      %255 = vmatprep.subr.bf16.mxu0 0
      %256 = vmatpush1.bf16.msra.mxu0 0
      %257 = vmatprep.subr.bf16.mxu0 0
      %258 = vmatpush1.bf16.msra.mxu0 0
      %259 = vmatprep.subr.bf16.mxu0 0
      %260 = vmatpush1.bf16.msra.mxu0 0
      %261 = vmatprep.subr.bf16.mxu0 0
      %262 = vmatpush1.bf16.msra.mxu0 0
      %263 = vmatprep.subr.bf16.mxu0 0
      %264 = vmatpush1.bf16.msra.mxu0 0
      %265 = vmatprep.subr.bf16.mxu0 0
      %266 = vmatpush1.bf16.msra.mxu0 0
      %267 = vmatprep.subr.bf16.mxu0 0
      %268 = vmatpush1.bf16.msra.mxu0 0
      %269 = vmatprep.mubr.bf16.mxu0 0
      %270 = vmatmul.mubr.bf16.gmra.mrb[0].mxu0 %v231
      %v271 = vpop.f32.mrb[0].mxu0
      %v272 = vadd.f32 0.0, %v271
      %v273 = vpop.f32.mrb[0].mxu0
      %v274 = vpop.f32.mrb[0].mxu0
      %v275 = vpop.f32.mrb[0].mxu0
      %276 = vdwg.mxu0
      %277 = vrot.lane.b32.xlu0 %v157, 120
      %v278 = vpop.permute.xlu0 %277
      %279 = vrot.lane.b32.xlu0 %v157, 88
      %v280 = vpop.permute.xlu0 %279
      %v282 = vsel %vm161, %v278, 0
      %v285 = vsel %vm161, %v280, 0
      %287 = vmatprep.subr.bf16.mxu0 0
      %288 = vmatpush1.bf16.xpose.msra.mxu0 %v285
      %289 = vmatprep.subr.bf16.mxu0 0
      %290 = vmatpush1.bf16.xpose.msra.mxu0 0
      %291 = vmatprep.subr.bf16.mxu0 0
      %292 = vmatpush1.bf16.xpose.msra.mxu0 0
      %293 = vmatprep.subr.bf16.mxu0 0
      %294 = vmatpush1.bf16.xpose.msra.mxu0 0
      %295 = vmatprep.subr.bf16.mxu0 0
      %296 = vmatpush1.bf16.xpose.msra.mxu0 0
      %297 = vmatprep.subr.bf16.mxu0 0
      %298 = vmatpush1.bf16.xpose.msra.mxu0 0
      %299 = vmatprep.subr.bf16.mxu0 0
      %300 = vmatpush1.bf16.xpose.msra.mxu0 0
      %301 = vmatprep.subr.bf16.mxu0 0
      %302 = vmatpush1.bf16.xpose.msra.mxu0 0
      %303 = vmatprep.subr.bf16.mxu0 0
      %304 = vmatpush1.bf16.xpose.msra.mxu0 0
      %305 = vmatprep.subr.bf16.mxu0 0
      %306 = vmatpush1.bf16.xpose.msra.mxu0 0
      %307 = vmatprep.subr.bf16.mxu0 0
      %308 = vmatpush1.bf16.xpose.msra.mxu0 0
      %309 = vmatprep.subr.bf16.mxu0 0
      %310 = vmatpush1.bf16.xpose.msra.mxu0 0
      %311 = vmatprep.subr.bf16.mxu0 0
      %312 = vmatpush1.bf16.xpose.msra.mxu0 0
      %313 = vmatprep.subr.bf16.mxu0 0
      %314 = vmatpush1.bf16.xpose.msra.mxu0 0
      %315 = vmatprep.subr.bf16.mxu0 0
      %316 = vmatpush1.bf16.xpose.msra.mxu0 0
      %317 = vmatprep.subr.bf16.mxu0 0
      %318 = vmatpush1.bf16.xpose.msra.mxu0 0
      %319 = vmatprep.mubr.bf16.mxu0 0
      %320 = vmatmul.mubr.bf16.gmra.mrb[0].mxu0 %v282
      %v321 = vpop.f32.mrb[0].mxu0
      %v322 = vadd.f32 0.0, %v321
      %v323 = vpop.f32.mrb[0].mxu0
      %v324 = vpop.f32.mrb[0].mxu0
      %v325 = vpop.f32.mrb[0].mxu0
      %326 = vdwg.mxu0
      %v327 = vmul.f32 %v322, 0.35355338
      %v328 = vsel %vm214, %v327, -1e+09
      %v329 = vsel %vm161, %v328, -inf
      %330 = vmax.xlane.f32.xlu0 %v329
      %v331 = vpop.xlane.xlu0 %330
      %v332 = vsub.f32 %v328, %v331
      %v333 = vmul.f32 %v332, 1.442695
      %v334 = vpow.pop %v333
      %v335 = vsel %vm161, %v334, 0.0
      %336 = vadd.xlane.f32.xlu0 %v335
      %v337 = vpop.xlane.xlu0 %336
      %v338 = vrcp.pop %v337
      %v339 = vmul.f32 %v334, %v338
      %v340 = vpack.c.bf16 %v339, %v339
      %341 = vrot.lane.b32.xlu0 %v157, 56
      %v342 = vpop.permute.xlu0 %341
      %v344 = vsel %vm161, %v340, 0
      %v347 = vsel %vm233, %v342, 0
      %349 = vmatprep.subr.bf16.mxu0 0
      %350 = vmatpush1.bf16.msra.mxu0 %v347
      %351 = vmatprep.subr.bf16.mxu0 0
      %352 = vmatpush1.bf16.msra.mxu0 0
      %353 = vmatprep.subr.bf16.mxu0 0
      %354 = vmatpush1.bf16.msra.mxu0 0
      %355 = vmatprep.subr.bf16.mxu0 0
      %356 = vmatpush1.bf16.msra.mxu0 0
      %357 = vmatprep.subr.bf16.mxu0 0
      %358 = vmatpush1.bf16.msra.mxu0 0
      %359 = vmatprep.subr.bf16.mxu0 0
      %360 = vmatpush1.bf16.msra.mxu0 0
      %361 = vmatprep.subr.bf16.mxu0 0
      %362 = vmatpush1.bf16.msra.mxu0 0
      %363 = vmatprep.subr.bf16.mxu0 0
      %364 = vmatpush1.bf16.msra.mxu0 0
      %365 = vmatprep.subr.bf16.mxu0 0
      %366 = vmatpush1.bf16.msra.mxu0 0
      %367 = vmatprep.subr.bf16.mxu0 0
      %368 = vmatpush1.bf16.msra.mxu0 0
      %369 = vmatprep.subr.bf16.mxu0 0
      %370 = vmatpush1.bf16.msra.mxu0 0
      %371 = vmatprep.subr.bf16.mxu0 0
      %372 = vmatpush1.bf16.msra.mxu0 0
      %373 = vmatprep.subr.bf16.mxu0 0
      %374 = vmatpush1.bf16.msra.mxu0 0
      %375 = vmatprep.subr.bf16.mxu0 0
      %376 = vmatpush1.bf16.msra.mxu0 0
      %377 = vmatprep.subr.bf16.mxu0 0
      %378 = vmatpush1.bf16.msra.mxu0 0
      %379 = vmatprep.subr.bf16.mxu0 0
      %380 = vmatpush1.bf16.msra.mxu0 0
      %381 = vmatprep.mubr.bf16.mxu0 0
      %382 = vmatmul.mubr.bf16.gmra.mrb[0].mxu0 %v344
      %v383 = vpop.f32.mrb[0].mxu0
      %v384 = vadd.f32 0.0, %v383
      %v385 = vpop.f32.mrb[0].mxu0
      %v386 = vpop.f32.mrb[0].mxu0
      %v387 = vpop.f32.mrb[0].mxu0
      %388 = vdwg.mxu0
      %389 = vrot.lane.b32.xlu0 %v157, 112
      %v390 = vpop.permute.xlu0 %389
      %391 = vrot.lane.b32.xlu0 %v157, 80
      %v392 = vpop.permute.xlu0 %391
      %v394 = vsel %vm161, %v390, 0
      %v397 = vsel %vm161, %v392, 0
      %399 = vmatprep.subr.bf16.mxu0 0
      %400 = vmatpush1.bf16.xpose.msra.mxu0 %v397
      %401 = vmatprep.subr.bf16.mxu0 0
      %402 = vmatpush1.bf16.xpose.msra.mxu0 0
      %403 = vmatprep.subr.bf16.mxu0 0
      %404 = vmatpush1.bf16.xpose.msra.mxu0 0
      %405 = vmatprep.subr.bf16.mxu0 0
      %406 = vmatpush1.bf16.xpose.msra.mxu0 0
      %407 = vmatprep.subr.bf16.mxu0 0
      %408 = vmatpush1.bf16.xpose.msra.mxu0 0
      %409 = vmatprep.subr.bf16.mxu0 0
      %410 = vmatpush1.bf16.xpose.msra.mxu0 0
      %411 = vmatprep.subr.bf16.mxu0 0
      %412 = vmatpush1.bf16.xpose.msra.mxu0 0
      %413 = vmatprep.subr.bf16.mxu0 0
      %414 = vmatpush1.bf16.xpose.msra.mxu0 0
      %415 = vmatprep.subr.bf16.mxu0 0
      %416 = vmatpush1.bf16.xpose.msra.mxu0 0
      %417 = vmatprep.subr.bf16.mxu0 0
      %418 = vmatpush1.bf16.xpose.msra.mxu0 0
      %419 = vmatprep.subr.bf16.mxu0 0
      %420 = vmatpush1.bf16.xpose.msra.mxu0 0
      %421 = vmatprep.subr.bf16.mxu0 0
      %422 = vmatpush1.bf16.xpose.msra.mxu0 0
      %423 = vmatprep.subr.bf16.mxu0 0
      %424 = vmatpush1.bf16.xpose.msra.mxu0 0
      %425 = vmatprep.subr.bf16.mxu0 0
      %426 = vmatpush1.bf16.xpose.msra.mxu0 0
      %427 = vmatprep.subr.bf16.mxu0 0
      %428 = vmatpush1.bf16.xpose.msra.mxu0 0
      %429 = vmatprep.subr.bf16.mxu0 0
      %430 = vmatpush1.bf16.xpose.msra.mxu0 0
      %431 = vmatprep.mubr.bf16.mxu0 0
      %432 = vmatmul.mubr.bf16.gmra.mrb[0].mxu0 %v394
      %v433 = vpop.f32.mrb[0].mxu0
      %v434 = vadd.f32 0.0, %v433
      %v435 = vpop.f32.mrb[0].mxu0
      %v436 = vpop.f32.mrb[0].mxu0
      %v437 = vpop.f32.mrb[0].mxu0
      %438 = vdwg.mxu0
      %v439 = vmul.f32 %v434, 0.35355338
      %v440 = vsel %vm214, %v439, -1e+09
      %v441 = vsel %vm161, %v440, -inf
      %442 = vmax.xlane.f32.xlu0 %v441
      %v443 = vpop.xlane.xlu0 %442
      %v444 = vsub.f32 %v440, %v443
      %v445 = vmul.f32 %v444, 1.442695
      %v446 = vpow.pop %v445
      %v447 = vsel %vm161, %v446, 0.0
      %448 = vadd.xlane.f32.xlu0 %v447
      %v449 = vpop.xlane.xlu0 %448
      %v450 = vrcp.pop %v449
      %v451 = vmul.f32 %v446, %v450
      %v452 = vpack.c.bf16 %v451, %v451
      %453 = vrot.lane.b32.xlu0 %v157, 48
      %v454 = vpop.permute.xlu0 %453
      %v456 = vsel %vm161, %v452, 0
      %v459 = vsel %vm233, %v454, 0
      %461 = vmatprep.subr.bf16.mxu0 0
      %462 = vmatpush1.bf16.msra.mxu0 %v459
      %463 = vmatprep.subr.bf16.mxu0 0
      %464 = vmatpush1.bf16.msra.mxu0 0
      %465 = vmatprep.subr.bf16.mxu0 0
      %466 = vmatpush1.bf16.msra.mxu0 0
      %467 = vmatprep.subr.bf16.mxu0 0
      %468 = vmatpush1.bf16.msra.mxu0 0
      %469 = vmatprep.subr.bf16.mxu0 0
      %470 = vmatpush1.bf16.msra.mxu0 0
      %471 = vmatprep.subr.bf16.mxu0 0
      %472 = vmatpush1.bf16.msra.mxu0 0
      %473 = vmatprep.subr.bf16.mxu0 0
      %474 = vmatpush1.bf16.msra.mxu0 0
      %475 = vmatprep.subr.bf16.mxu0 0
      %476 = vmatpush1.bf16.msra.mxu0 0
      %477 = vmatprep.subr.bf16.mxu0 0
      %478 = vmatpush1.bf16.msra.mxu0 0
      %479 = vmatprep.subr.bf16.mxu0 0
      %480 = vmatpush1.bf16.msra.mxu0 0
      %481 = vmatprep.subr.bf16.mxu0 0
      %482 = vmatpush1.bf16.msra.mxu0 0
      %483 = vmatprep.subr.bf16.mxu0 0
      %484 = vmatpush1.bf16.msra.mxu0 0
      %485 = vmatprep.subr.bf16.mxu0 0
      %486 = vmatpush1.bf16.msra.mxu0 0
      %487 = vmatprep.subr.bf16.mxu0 0
      %488 = vmatpush1.bf16.msra.mxu0 0
      %489 = vmatprep.subr.bf16.mxu0 0
      %490 = vmatpush1.bf16.msra.mxu0 0
      %491 = vmatprep.subr.bf16.mxu0 0
      %492 = vmatpush1.bf16.msra.mxu0 0
      %493 = vmatprep.mubr.bf16.mxu0 0
      %494 = vmatmul.mubr.bf16.gmra.mrb[0].mxu0 %v456
      %v495 = vpop.f32.mrb[0].mxu0
      %v496 = vadd.f32 0.0, %v495
      %v497 = vpop.f32.mrb[0].mxu0
      %v498 = vpop.f32.mrb[0].mxu0
      %v499 = vpop.f32.mrb[0].mxu0
      %500 = vdwg.mxu0
      %501 = vrot.lane.b32.xlu0 %v157, 104
      %v502 = vpop.permute.xlu0 %501
      %503 = vrot.lane.b32.xlu0 %v157, 72
      %v504 = vpop.permute.xlu0 %503
      %v506 = vsel %vm161, %v502, 0
      %v509 = vsel %vm161, %v504, 0
      %511 = vmatprep.subr.bf16.mxu0 0
      %512 = vmatpush1.bf16.xpose.msra.mxu0 %v509
      %513 = vmatprep.subr.bf16.mxu0 0
      %514 = vmatpush1.bf16.xpose.msra.mxu0 0
      %515 = vmatprep.subr.bf16.mxu0 0
      %516 = vmatpush1.bf16.xpose.msra.mxu0 0
      %517 = vmatprep.subr.bf16.mxu0 0
      %518 = vmatpush1.bf16.xpose.msra.mxu0 0
      %519 = vmatprep.subr.bf16.mxu0 0
      %520 = vmatpush1.bf16.xpose.msra.mxu0 0
      %521 = vmatprep.subr.bf16.mxu0 0
      %522 = vmatpush1.bf16.xpose.msra.mxu0 0
      %523 = vmatprep.subr.bf16.mxu0 0
      %524 = vmatpush1.bf16.xpose.msra.mxu0 0
      %525 = vmatprep.subr.bf16.mxu0 0
      %526 = vmatpush1.bf16.xpose.msra.mxu0 0
      %527 = vmatprep.subr.bf16.mxu0 0
      %528 = vmatpush1.bf16.xpose.msra.mxu0 0
      %529 = vmatprep.subr.bf16.mxu0 0
      %530 = vmatpush1.bf16.xpose.msra.mxu0 0
      %531 = vmatprep.subr.bf16.mxu0 0
      %532 = vmatpush1.bf16.xpose.msra.mxu0 0
      %533 = vmatprep.subr.bf16.mxu0 0
      %534 = vmatpush1.bf16.xpose.msra.mxu0 0
      %535 = vmatprep.subr.bf16.mxu0 0
      %536 = vmatpush1.bf16.xpose.msra.mxu0 0
      %537 = vmatprep.subr.bf16.mxu0 0
      %538 = vmatpush1.bf16.xpose.msra.mxu0 0
      %539 = vmatprep.subr.bf16.mxu0 0
      %540 = vmatpush1.bf16.xpose.msra.mxu0 0
      %541 = vmatprep.subr.bf16.mxu0 0
      %542 = vmatpush1.bf16.xpose.msra.mxu0 0
      %543 = vmatprep.mubr.bf16.mxu0 0
      %544 = vmatmul.mubr.bf16.gmra.mrb[0].mxu0 %v506
      %v545 = vpop.f32.mrb[0].mxu0
      %v546 = vadd.f32 0.0, %v545
      %v547 = vpop.f32.mrb[0].mxu0
      %v548 = vpop.f32.mrb[0].mxu0
      %v549 = vpop.f32.mrb[0].mxu0
      %550 = vdwg.mxu0
      %v551 = vmul.f32 %v546, 0.35355338
      %v552 = vsel %vm214, %v551, -1e+09
      %v553 = vsel %vm161, %v552, -inf
      %554 = vmax.xlane.f32.xlu0 %v553
      %v555 = vpop.xlane.xlu0 %554
      %v556 = vsub.f32 %v552, %v555
      %v557 = vmul.f32 %v556, 1.442695
      %v558 = vpow.pop %v557
      %v559 = vsel %vm161, %v558, 0.0
      %560 = vadd.xlane.f32.xlu0 %v559
      %v561 = vpop.xlane.xlu0 %560
      %v562 = vrcp.pop %v561
      %v563 = vmul.f32 %v558, %v562
      %v564 = vpack.c.bf16 %v563, %v563
      %565 = vrot.lane.b32.xlu0 %v157, 40
      %v566 = vpop.permute.xlu0 %565
      %v568 = vsel %vm161, %v564, 0
      %v571 = vsel %vm233, %v566, 0
      %573 = vmatprep.subr.bf16.mxu0 0
      %574 = vmatpush1.bf16.msra.mxu0 %v571
      %575 = vmatprep.subr.bf16.mxu0 0
      %576 = vmatpush1.bf16.msra.mxu0 0
      %577 = vmatprep.subr.bf16.mxu0 0
      %578 = vmatpush1.bf16.msra.mxu0 0
      %579 = vmatprep.subr.bf16.mxu0 0
      %580 = vmatpush1.bf16.msra.mxu0 0
      %581 = vmatprep.subr.bf16.mxu0 0
      %582 = vmatpush1.bf16.msra.mxu0 0
      %583 = vmatprep.subr.bf16.mxu0 0
      %584 = vmatpush1.bf16.msra.mxu0 0
      %585 = vmatprep.subr.bf16.mxu0 0
      %586 = vmatpush1.bf16.msra.mxu0 0
      %587 = vmatprep.subr.bf16.mxu0 0
      %588 = vmatpush1.bf16.msra.mxu0 0
      %589 = vmatprep.subr.bf16.mxu0 0
      %590 = vmatpush1.bf16.msra.mxu0 0
      %591 = vmatprep.subr.bf16.mxu0 0
      %592 = vmatpush1.bf16.msra.mxu0 0
      %593 = vmatprep.subr.bf16.mxu0 0
      %594 = vmatpush1.bf16.msra.mxu0 0
      %595 = vmatprep.subr.bf16.mxu0 0
      %596 = vmatpush1.bf16.msra.mxu0 0
      %597 = vmatprep.subr.bf16.mxu0 0
      %598 = vmatpush1.bf16.msra.mxu0 0
      %599 = vmatprep.subr.bf16.mxu0 0
      %600 = vmatpush1.bf16.msra.mxu0 0
      %601 = vmatprep.subr.bf16.mxu0 0
      %602 = vmatpush1.bf16.msra.mxu0 0
      %603 = vmatprep.subr.bf16.mxu0 0
      %604 = vmatpush1.bf16.msra.mxu0 0
      %605 = vmatprep.mubr.bf16.mxu0 0
      %606 = vmatmul.mubr.bf16.gmra.mrb[0].mxu0 %v568
      %v607 = vpop.f32.mrb[0].mxu0
      %v608 = vadd.f32 0.0, %v607
      %v609 = vpop.f32.mrb[0].mxu0
      %v610 = vpop.f32.mrb[0].mxu0
      %v611 = vpop.f32.mrb[0].mxu0
      %612 = vdwg.mxu0
      %614 = vrot.lane.b32.xlu0 %v384, 8
      %v615 = vpop.permute.xlu0 %614
      %618 = vrot.lane.b32.xlu0 %v496, 16
      %v619 = vpop.permute.xlu0 %618
      %622 = vrot.lane.b32.xlu0 %v608, 24
      %v623 = vpop.permute.xlu0 %622
      %v625 = vsel %vm161, %v272, %v615
      %vm626 = vcmask 130048
      %v627 = vsel %vm626, %v625, %v619
      %vm628 = vcmask 195584
      %v629 = vsel %vm628, %v627, %v623
      %vm630 = vcmask 261120
      %631 = vst.msk [vmem:[%s152] sm:$0xff] %vm630, %v629
      %p632 = scmp.lt.s32.totalorder %s13, 1
      %s633 = scalar_select %p632, %s13, 1
      %s634 = smul.addr %s633, 8
      %s635 = scalar_lea.vmem %s2, %s634
      // Predicated region
      $region29: #{context_bert_forward.13} parent=27 // pred_check
        %p636 = pneg %p83
      $region30: #{context_bert_forward.13} parent=27 // pred_check_branch
        %638 = sbr.rel (%p636) target = $region32
      $region31: #{context_bert_forward.13} parent=27 // pred_region
        _
      $region32: #{context_bert_forward.13} parent=27 // pred_fallthru
        _
    $region28: #{context_bert_forward.13} parent=5 // pred_fallthru
      _
    %p639 = scmp.le.s32.totalorder 2, %s8
    // Predicated region
    $region33: #{context_bert_forward.13} parent=5 // pred_check
      %p640 = pneg %p639
    $region34: #{context_bert_forward.13} parent=5 // pred_check_branch
      %642 = sbr.rel (%p640) target = $region36
    $region35: #{context_bert_forward.13} parent=5 // pred_region
      %s643 = ssub.s32 %s8, 2
      // Predicated region
      $region37: #{context_bert_forward.13} parent=35 // pred_check
        %p644 = pneg %p89
      $region38: #{context_bert_forward.13} parent=35 // pred_check_branch
        %646 = sbr.rel (%p644) target = $region40
      $region39: #{context_bert_forward.13} parent=35 // pred_region
        %p647 = scmp.lt.s32.totalorder %s14, 1
        %s648 = scalar_select %p647, %s14, 1
        %s649 = smul.addr %s648, 8
        %s650 = scalar_lea.vmem %s2, %s649
      $region40: #{context_bert_forward.13} parent=35 // pred_fallthru
        _
    $region36: #{context_bert_forward.13} parent=5 // pred_fallthru
      _
  $region6: #{context_bert_forward.13} parent=0 // loop_footer
    %s12 = sadd.s32 1, %s8
  $region7: #{context_bert_forward.13} parent=0 // loop_footer_branch
    %7 = sbr.rel target = $region3
  $region8: #{context_bert_forward.13} parent=0 // loop_exit
    _

// kernel: context_bert_forward.16
$region0: #{context_bert_forward.16}
  #allocation0 [shape = 'u32[]', space=smem, size = 0x4, offset = 0x4, fixed_abs, tag = 'smem constant byte address 0x4 - core index']
  #allocation1 [shape = 'u32[144,128]{1,0:T(1,128)}', space=vmem, size = 0x12000, scoped, tag = 'internal scratch']
  %s0 = inlined_call_operand.vmem [shape: f32[16,128], index: 0, kind: input, shape index: {}]
  %s1 = inlined_call_operand.vmem [shape: bf16[128,32], index: 1, kind: input, shape index: {}]
  %s2 = inlined_call_operand.vmem [shape: f32[1,32], index: 2, kind: input, shape index: {}]
  %s3 = inlined_call_operand.vmem [shape: f32[16,32], index: 3, kind: input, shape index: {}, may-alias: {3,4}]
  %s4 = inlined_call_operand.vmem [shape: f32[16,32], index: 4, kind: output, shape index: {}, may-alias: {3,4}]
  %s5 = sld [smem:[#allocation0]]
  $region26: #{context_bert_forward.16} parent=0
    _
  %s7 = ssub.s32 1, %s5
  %s8 = scalar_select 0, %s7, %s5
  // Predicated region
  $region2: #{context_bert_forward.16} parent=0 // pred_check
    _
  $region3: #{context_bert_forward.16} parent=0 // pred_check_branch
    %10 = sbr.rel (0) target = $region5
  $region4: #{context_bert_forward.16} parent=0 // pred_region
    _
  $region5: #{context_bert_forward.16} parent=0 // pred_fallthru
    _
  // Predicated region
  $region6: #{context_bert_forward.16} parent=0 // pred_check
    _
  $region7: #{context_bert_forward.16} parent=0 // pred_check_branch
    %12 = sbr.rel (0) target = $region9
  $region8: #{context_bert_forward.16} parent=0 // pred_region
    _
  $region9: #{context_bert_forward.16} parent=0 // pred_fallthru
    _
  // Predicated region
  $region10: #{context_bert_forward.16} parent=0 // pred_check
    _
  $region11: #{context_bert_forward.16} parent=0 // pred_check_branch
    %14 = sbr.rel (0) target = $region13
  $region12: #{context_bert_forward.16} parent=0 // pred_region
    _
  $region13: #{context_bert_forward.16} parent=0 // pred_fallthru
    _
  // Predicated region
  $region14: #{context_bert_forward.16} parent=0 // pred_check
    _
  $region15: #{context_bert_forward.16} parent=0 // pred_check_branch
    %16 = sbr.rel (0) target = $region17
  $region16: #{context_bert_forward.16} parent=0 // pred_region
    _
  $region17: #{context_bert_forward.16} parent=0 // pred_fallthru
    _
  %v18 = vld [vmem:[%s0] sm:$0xff]
  %v19 = vld [vmem:[%s0 + $0x8] sm:$0xff]
  %v20 = vpack.c.bf16 %v19, %v18
  %v21 = vld [vmem:[%s1] sm:$0xf]
  %v22 = vld [vmem:[%s1 + $0x4] sm:$0xf]
  %v23 = vld [vmem:[%s1 + $0x8] sm:$0xf]
  %v24 = vld [vmem:[%s1 + $0xc] sm:$0xf]
  %v25 = vld [vmem:[%s1 + $0x10] sm:$0xf]
  %v26 = vld [vmem:[%s1 + $0x14] sm:$0xf]
  %v27 = vld [vmem:[%s1 + $0x18] sm:$0xf]
  %v28 = vld [vmem:[%s1 + $0x1c] sm:$0xf]
  %v29 = vld [vmem:[%s1 + $0x20] sm:$0xf]
  %v30 = vld [vmem:[%s1 + $0x24] sm:$0xf]
  %v31 = vld [vmem:[%s1 + $0x28] sm:$0xf]
  %v32 = vld [vmem:[%s1 + $0x2c] sm:$0xf]
  %v33 = vld [vmem:[%s1 + $0x30] sm:$0xf]
  %v34 = vld [vmem:[%s1 + $0x34] sm:$0xf]
  %v35 = vld [vmem:[%s1 + $0x38] sm:$0xf]
  %v36 = vld [vmem:[%s1 + $0x3c] sm:$0xf]
  %v37 = vld [vmem:[%s2] sm:$0x1]
  %v39 = vlaneseq
  %v40 = vshrl.u32 %v39, 7
  %v41 = vsub.s32 0, %v40
  %v42 = vrot.slane %v37, %v41
  %v60 = vunpack.c.l.b16 %v21
  %v61 = vunpack.c.l.b16 %v22
  %v62 = vunpack.c.l.b16 %v23
  %v63 = vunpack.c.l.b16 %v24
  %v64 = vunpack.c.l.b16 %v25
  %v65 = vunpack.c.l.b16 %v26
  %v66 = vunpack.c.l.b16 %v27
  %v67 = vunpack.c.l.b16 %v28
  %v68 = vunpack.c.l.b16 %v29
  %v69 = vunpack.c.l.b16 %v30
  %v70 = vunpack.c.l.b16 %v31
  %v71 = vunpack.c.l.b16 %v32
  %v72 = vunpack.c.l.b16 %v33
  %v73 = vunpack.c.l.b16 %v34
  %v74 = vunpack.c.l.b16 %v35
  %v75 = vunpack.c.l.b16 %v36
  %v76 = vpack.c.b16 %v61, %v60
  %v77 = vpack.c.b16 %v63, %v62
  %v78 = vpack.c.b16 %v65, %v64
  %v79 = vpack.c.b16 %v67, %v66
  %v80 = vpack.c.b16 %v69, %v68
  %v81 = vpack.c.b16 %v71, %v70
  %v82 = vpack.c.b16 %v73, %v72
  %v83 = vpack.c.b16 %v75, %v74
  %92 = vmatprep.subr.bf16.mxu0 0
  %93 = vmatpush1.bf16.msra.mxu0 %v76
  %94 = vmatprep.subr.bf16.mxu0 0
  %95 = vmatpush1.bf16.msra.mxu0 %v77
  %96 = vmatprep.subr.bf16.mxu0 0
  %97 = vmatpush1.bf16.msra.mxu0 %v78
  %98 = vmatprep.subr.bf16.mxu0 0
  %99 = vmatpush1.bf16.msra.mxu0 %v79
  %100 = vmatprep.subr.bf16.mxu0 0
  %101 = vmatpush1.bf16.msra.mxu0 %v80
  %102 = vmatprep.subr.bf16.mxu0 0
  %103 = vmatpush1.bf16.msra.mxu0 %v81
  %104 = vmatprep.subr.bf16.mxu0 0
  %105 = vmatpush1.bf16.msra.mxu0 %v82
  %106 = vmatprep.subr.bf16.mxu0 0
  %107 = vmatpush1.bf16.msra.mxu0 %v83
  %108 = vmatprep.subr.bf16.mxu0 0
  %109 = vmatpush1.bf16.msra.mxu0 0
  %110 = vmatprep.subr.bf16.mxu0 0
  %111 = vmatpush1.bf16.msra.mxu0 0
  %112 = vmatprep.subr.bf16.mxu0 0
  %113 = vmatpush1.bf16.msra.mxu0 0
  %114 = vmatprep.subr.bf16.mxu0 0
  %115 = vmatpush1.bf16.msra.mxu0 0
  %116 = vmatprep.subr.bf16.mxu0 0
  %117 = vmatpush1.bf16.msra.mxu0 0
  %118 = vmatprep.subr.bf16.mxu0 0
  %119 = vmatpush1.bf16.msra.mxu0 0
  %120 = vmatprep.subr.bf16.mxu0 0
  %121 = vmatpush1.bf16.msra.mxu0 0
  %122 = vmatprep.subr.bf16.mxu0 0
  %123 = vmatpush1.bf16.msra.mxu0 0
  %124 = vmatprep.mubr.bf16.mxu0 0
  %125 = vmatmul.mubr.bf16.gmra.mrb[0].mxu0 %v20
  %v126 = vpop.f32.mrb[0].mxu0
  %v127 = vadd.f32 %v42, %v126
  %v128 = vpop.f32.mrb[0].mxu0
  %v129 = vpop.f32.mrb[0].mxu0
  %v130 = vadd.f32 %v42, %v129
  %v131 = vpop.f32.mrb[0].mxu0
  %132 = vdwg.mxu0
  %v133 = vld [vmem:[%s3] sm:$0xff]
  %v134 = vld [vmem:[%s3 + $0x8] sm:$0xff]
  %v135 = vadd.f32 %v127, %v133
  %v136 = vadd.f32 %v130, %v134
  %vm137 = vcmask 261120
  %138 = vst.msk [vmem:[%s4] sm:$0xff] %vm137, %v135
  %139 = vst.msk [vmem:[%s4 + $0x8] sm:$0xff] %vm137, %v136
  // Predicated region
  $region18: #{context_bert_forward.16} parent=0 // pred_check
    _
  $region19: #{context_bert_forward.16} parent=0 // pred_check_branch
    %141 = sbr.rel (0) target = $region21
  $region20: #{context_bert_forward.16} parent=0 // pred_region
    _
  $region21: #{context_bert_forward.16} parent=0 // pred_fallthru
    _
  // Predicated region
  $region22: #{context_bert_forward.16} parent=0 // pred_check
    _
  $region23: #{context_bert_forward.16} parent=0 // pred_check_branch
    %143 = sbr.rel (0) target = $region25
  $region24: #{context_bert_forward.16} parent=0 // pred_region
    _
  $region25: #{context_bert_forward.16} parent=0 // pred_fallthru
    _

// kernel: context_bert_forward.15
$region0: #{context_bert_forward.15}
  #allocation0 [shape = 'u32[]', space=smem, size = 0x4, offset = 0x4, fixed_abs, tag = 'smem constant byte address 0x4 - core index']
  #allocation1 [shape = 'u32[144,128]{1,0:T(1,128)}', space=vmem, size = 0x12000, scoped, tag = 'internal scratch']
  %s0 = inlined_call_operand.vmem [shape: f32[16,32], index: 0, kind: input, shape index: {}]
  %s1 = inlined_call_operand.vmem [shape: f32[1,32], index: 1, kind: input, shape index: {}]
  %s2 = inlined_call_operand.vmem [shape: f32[1,32], index: 2, kind: input, shape index: {}]
  %s3 = inlined_call_operand.vmem [shape: bf16[32,128], index: 3, kind: input, shape index: {}]
  %s4 = inlined_call_operand.vmem [shape: f32[1,128], index: 4, kind: input, shape index: {}]
  %s5 = inlined_call_operand.vmem [shape: f32[16,128], index: 5, kind: output, shape index: {}]
  %s6 = sld [smem:[#allocation0]]
  $region30: #{context_bert_forward.15} parent=0
    _
  %s8 = ssub.s32 1, %s6
  %s9 = scalar_select 0, %s8, %s6
  // Predicated region
  $region2: #{context_bert_forward.15} parent=0 // pred_check
    _
  $region3: #{context_bert_forward.15} parent=0 // pred_check_branch
    %11 = sbr.rel (0) target = $region5
  $region4: #{context_bert_forward.15} parent=0 // pred_region
    _
  $region5: #{context_bert_forward.15} parent=0 // pred_fallthru
    _
  // Predicated region
  $region6: #{context_bert_forward.15} parent=0 // pred_check
    _
  $region7: #{context_bert_forward.15} parent=0 // pred_check_branch
    %13 = sbr.rel (0) target = $region9
  $region8: #{context_bert_forward.15} parent=0 // pred_region
    _
  $region9: #{context_bert_forward.15} parent=0 // pred_fallthru
    _
  // Predicated region
  $region10: #{context_bert_forward.15} parent=0 // pred_check
    _
  $region11: #{context_bert_forward.15} parent=0 // pred_check_branch
    %15 = sbr.rel (0) target = $region13
  $region12: #{context_bert_forward.15} parent=0 // pred_region
    _
  $region13: #{context_bert_forward.15} parent=0 // pred_fallthru
    _
  // Predicated region
  $region14: #{context_bert_forward.15} parent=0 // pred_check
    _
  $region15: #{context_bert_forward.15} parent=0 // pred_check_branch
    %17 = sbr.rel (0) target = $region17
  $region16: #{context_bert_forward.15} parent=0 // pred_region
    _
  $region17: #{context_bert_forward.15} parent=0 // pred_fallthru
    _
  // Predicated region
  $region18: #{context_bert_forward.15} parent=0 // pred_check
    _
  $region19: #{context_bert_forward.15} parent=0 // pred_check_branch
    %19 = sbr.rel (0) target = $region21
  $region20: #{context_bert_forward.15} parent=0 // pred_region
    _
  $region21: #{context_bert_forward.15} parent=0 // pred_fallthru
    _
  %v21 = vld [vmem:[%s0] sm:$0xff]
  %v22 = vld [vmem:[%s0 + $0x8] sm:$0xff]
  %vm23 = vcmask 261120
  %v24 = vsel %vm23, %v21, 0.0
  %25 = vadd.xlane.f32.xlu0 %v24
  %v26 = vpop.xlane.xlu0 %25
  %v27 = vsel %vm23, %v22, 0.0
  %28 = vadd.xlane.f32.xlu0 %v27
  %v29 = vpop.xlane.xlu0 %28
  %v30 = vrcp.pop 32.0
  %v31 = vmul.f32 %v26, %v30
  %v32 = vmul.f32 %v29, %v30
  %v33 = vsub.f32 %v21, %v31
  %v34 = vsub.f32 %v22, %v32
  %v35 = vmul.f32 %v33, %v33
  %v36 = vmul.f32 %v34, %v34
  %v37 = vsel %vm23, %v35, 0.0
  %38 = vadd.xlane.f32.xlu0 %v37
  %v39 = vpop.xlane.xlu0 %38
  %v40 = vsel %vm23, %v36, 0.0
  %41 = vadd.xlane.f32.xlu0 %v40
  %v42 = vpop.xlane.xlu0 %41
  %v43 = vmul.f32 %v39, %v30
  %v44 = vmul.f32 %v42, %v30
  %v45 = vadd.f32 %v43, 1e-06
  %v46 = vadd.f32 %v44, 1e-06
  %v47 = vrsqrt.pop %v45
  %v48 = vrsqrt.pop %v46
  %v49 = vmul.f32 %v33, %v47
  %v50 = vmul.f32 %v34, %v48
  %v51 = vld [vmem:[%s1] sm:$0x1]
  %v53 = vlaneseq
  %v54 = vshrl.u32 %v53, 7
  %v55 = vsub.s32 0, %v54
  %v56 = vrot.slane %v51, %v55
  %v58 = vmul.f32 %v49, %v56
  %v59 = vmul.f32 %v50, %v56
  %v60 = vld [vmem:[%s2] sm:$0x1]
  %v62 = vlaneseq
  %v63 = vshrl.u32 %v62, 7
  %v64 = vsub.s32 0, %v63
  %v65 = vrot.slane %v60, %v64
  %v67 = vadd.f32 %v58, %v65
  %v68 = vadd.f32 %v59, %v65
  %v69 = vpack.c.bf16 %v68, %v67
  %v70 = vld [vmem:[%s3] sm:$0xf]
  %v71 = vld [vmem:[%s3 + $0x4] sm:$0xf]
  %v72 = vld [vmem:[%s3 + $0x8] sm:$0xf]
  %v73 = vld [vmem:[%s3 + $0xc] sm:$0xf]
  %v74 = vld [vmem:[%s4] sm:$0x1]
  %v76 = vlaneseq
  %v77 = vshrl.u32 %v76, 7
  %v78 = vsub.s32 0, %v77
  %v79 = vrot.slane %v74, %v78
  %v85 = vunpack.c.l.b16 %v70
  %v86 = vunpack.c.l.b16 %v71
  %v87 = vunpack.c.l.b16 %v72
  %v88 = vunpack.c.l.b16 %v73
  %v89 = vpack.c.b16 %v86, %v85
  %v90 = vpack.c.b16 %v88, %v87
  %v94 = vsel %vm23, %v69, 0
  %96 = vmatprep.subr.bf16.mxu0 0
  %97 = vmatpush1.bf16.msra.mxu0 %v89
  %98 = vmatprep.subr.bf16.mxu0 0
  %99 = vmatpush1.bf16.msra.mxu0 %v90
  %100 = vmatprep.subr.bf16.mxu0 0
  %101 = vmatpush1.bf16.msra.mxu0 0
  %102 = vmatprep.subr.bf16.mxu0 0
  %103 = vmatpush1.bf16.msra.mxu0 0
  %104 = vmatprep.subr.bf16.mxu0 0
  %105 = vmatpush1.bf16.msra.mxu0 0
  %106 = vmatprep.subr.bf16.mxu0 0
  %107 = vmatpush1.bf16.msra.mxu0 0
  %108 = vmatprep.subr.bf16.mxu0 0
  %109 = vmatpush1.bf16.msra.mxu0 0
  %110 = vmatprep.subr.bf16.mxu0 0
  %111 = vmatpush1.bf16.msra.mxu0 0
  %112 = vmatprep.subr.bf16.mxu0 0
  %113 = vmatpush1.bf16.msra.mxu0 0
  %114 = vmatprep.subr.bf16.mxu0 0
  %115 = vmatpush1.bf16.msra.mxu0 0
  %116 = vmatprep.subr.bf16.mxu0 0
  %117 = vmatpush1.bf16.msra.mxu0 0
  %118 = vmatprep.subr.bf16.mxu0 0
  %119 = vmatpush1.bf16.msra.mxu0 0
  %120 = vmatprep.subr.bf16.mxu0 0
  %121 = vmatpush1.bf16.msra.mxu0 0
  %122 = vmatprep.subr.bf16.mxu0 0
  %123 = vmatpush1.bf16.msra.mxu0 0
  %124 = vmatprep.subr.bf16.mxu0 0
  %125 = vmatpush1.bf16.msra.mxu0 0
  %126 = vmatprep.subr.bf16.mxu0 0
  %127 = vmatpush1.bf16.msra.mxu0 0
  %128 = vmatprep.mubr.bf16.mxu0 0
  %129 = vmatmul.mubr.bf16.gmra.mrb[0].mxu0 %v94
  %v130 = vpop.f32.mrb[0].mxu0
  %v131 = vadd.f32 %v79, %v130
  %v132 = vpop.f32.mrb[0].mxu0
  %v133 = vpop.f32.mrb[0].mxu0
  %v134 = vadd.f32 %v79, %v133
  %v135 = vpop.f32.mrb[0].mxu0
  %136 = vdwg.mxu0
  %v137 = vmul.f32 %v131, 0.5
  %v138 = vmul.f32 %v134, 0.5
  %v139 = vmul.f32 %v131, 0.044715
  %v140 = vmul.f32 %v134, 0.044715
  %v141 = vmul.f32 %v139, %v131
  %v142 = vmul.f32 %v140, %v134
  %v143 = vmul.f32 %v141, %v131
  %v144 = vmul.f32 %v142, %v134
  %v145 = vadd.f32 %v131, %v143
  %v146 = vadd.f32 %v134, %v144
  %v147 = vmul.f32 %v145, 0.7978846
  %v148 = vmul.f32 %v146, 0.7978846
  %v149 = vtanh.pop %v147
  %v150 = vtanh.pop %v148
  %v151 = vadd.f32 %v149, 1.0
  %v152 = vadd.f32 %v150, 1.0
  %v153 = vmul.f32 %v137, %v151
  %v154 = vmul.f32 %v138, %v152
  %155 = vst [vmem:[%s5] sm:$0xff] %v153
  %156 = vst [vmem:[%s5 + $0x8] sm:$0xff] %v154
  // Predicated region
  $region22: #{context_bert_forward.15} parent=0 // pred_check
    _
  $region23: #{context_bert_forward.15} parent=0 // pred_check_branch
    %158 = sbr.rel (0) target = $region25
  $region24: #{context_bert_forward.15} parent=0 // pred_region
    _
  $region25: #{context_bert_forward.15} parent=0 // pred_fallthru
    _
  // Predicated region
  $region26: #{context_bert_forward.15} parent=0 // pred_check
    _
  $region27: #{context_bert_forward.15} parent=0 // pred_check_branch
    %160 = sbr.rel (0) target = $region29
  $region28: #{context_bert_forward.15} parent=0 // pred_region
    _
  $region29: #{context_bert_forward.15} parent=0 // pred_fallthru
    _

</llo_original>
